<compile_context>
chip_gen: v7x
topology: tpu7x:2x2x1
jax: 0.10.0
libtpu: 0.0.40
codegen_flags: <defaults>
</compile_context>

<pallas_src>
import math

import jax
import jax.numpy as jnp
from jax.experimental import pallas as pl
from jax.experimental.pallas import tpu as pltpu


def _gate_fusion_kernel(heads_ref, w1a_ref, w1b_ref, vecs_ref, w2_ref, out_ref):
    # heads_ref: (H, TN, D).  Pooled reductions run in f32 regardless of the
    # (possibly bf16) storage dtype: needed for mean accuracy and for v5e (no bf16
    # VPU).  Max is order-preserving under the upcast.
    heads = heads_ref[...].astype(jnp.float32)
    avg = jnp.mean(heads, axis=0)                     # (TN, D) f32
    mx = jnp.max(heads, axis=0)                       # (TN, D) f32

    vecs = vecs_ref[...]                              # (4, D) f32: b1, gamma, beta, b2
    b1, gamma, beta, b2 = vecs[0:1], vecs[1:2], vecs[2:3], vecs[3:4]

    lhs_dtype = w1a_ref.dtype                         # bf16 MXU operands, f32 acc

    # Linear(2D -> D): W1 pre-split along its input axis in the wrapper, so we never
    # materialise concat([avg, max], -1):  cat @ W1 == avg @ W1[:D] + mx @ W1[D:].
    # (A fused K=2D matmul would halve vmatmul pushes on v6e/v7x, but the kernel is
    #  memory-bound at D=128; the split is also MXU-native on v5e's 128x128 MXU.)
    h = (jnp.dot(avg.astype(lhs_dtype), w1a_ref[...],
                 preferred_element_type=jnp.float32)
         + jnp.dot(mx.astype(lhs_dtype), w1b_ref[...],
                   preferred_element_type=jnp.float32)
         + b1)

    # TODO(synk): Dropout(p=0.5) implemented as inference-mode identity (eval()).

    # LayerNorm(D): biased variance, eps=1e-5 (torch default).
    mu = jnp.mean(h, axis=-1, keepdims=True)
    var = jnp.mean(jnp.square(h - mu), axis=-1, keepdims=True)
    hn = (h - mu) * jax.lax.rsqrt(var + 1e-5) * gamma + beta

    # GELU (exact / erf form, matching torch nn.GELU() default numerics).
    # (EUP path -- rsqrt/erf/exp -- is not the critical slot while memory-bound.)
    g = 0.5 * hn * (1.0 + jax.lax.erf(hn * (1.0 / math.sqrt(2.0))))

    # Second Linear(D -> D) + Sigmoid.
    z = jnp.dot(g.astype(lhs_dtype), w2_ref[...],
                preferred_element_type=jnp.float32) + b2
    gate = jax.nn.sigmoid(z)

    # gate * avg + (1 - gate) * mx  ==  mx + gate * (avg - mx), using the f32 avg/mx.
    out_ref[...] = (mx + gate * (avg - mx)).astype(out_ref.dtype)


def _pick_row_tile(n_rows, tn):
    """Row tile: big (amortize ~0.35us/step), but keep >= 4 grid steps (v7x 2 TCs)."""
    if tn is None:
        tn = 1024 if n_rows >= 8192 else 512
    tn = max(8, min(int(tn), pl.cdiv(n_rows, 8) * 8))
    while tn > 8 and pl.cdiv(n_rows, tn) < 4:
        tn //= 2
    return max(8, (tn // 8) * 8)


def gate_fusion(heads, params, *, tn=None, matmul_dtype=jnp.bfloat16,
                heads_dtype=jnp.bfloat16, out_dtype=None):
    """heads: (H, N, D); params = (w1, b1, gamma, beta, w2, b2); returns (N, D).

    heads_dtype: storage dtype of the heads stream inside the kernel (default bf16 --
      the kernel is HBM-bound and heads reads are ~80% of bytes; ideally the caller
      already produces bf16 heads so the cast fuses upstream).  Set None to keep the
      input dtype.  Pooling / normalization / the final blend are f32 in-kernel.
    out_dtype: output dtype (default: the original heads dtype).
    """
    H, N, D = heads.shape
    w1, b1, gamma, beta, w2, b2 = params
    assert w1.shape == (2 * D, D) and w2.shape == (D, D)

    orig_dtype = heads.dtype
    out_dtype = orig_dtype if out_dtype is None else out_dtype
    if heads_dtype is not None and jnp.dtype(heads_dtype).itemsize < jnp.dtype(orig_dtype).itemsize:
        heads = heads.astype(heads_dtype)

    # Split W1 along its input axis (avoids the lane-axis concat inside the kernel)
    # and cast matmul weights to the MXU-native dtype.  Pack the four (1, D) f32
    # vectors into one (4, D) operand.
    w1a = w1[:D].astype(matmul_dtype)
    w1b = w1[D:].astype(matmul_dtype)
    w2c = w2.astype(matmul_dtype)
    vecs = jnp.concatenate([
        jnp.asarray(b1, jnp.float32).reshape(1, D),
        jnp.asarray(gamma, jnp.float32).reshape(1, D),
        jnp.asarray(beta, jnp.float32).reshape(1, D),
        jnp.asarray(b2, jnp.float32).reshape(1, D),
    ], axis=0)                                                    # (4, D) f32

    # Row tile / grid.
    tn = _pick_row_tile(N, tn)
    n_pad = (-N) % tn
    if n_pad:
        heads = jnp.pad(heads, ((0, 0), (0, n_pad), (0, 0)))
    n_rows = N + n_pad
    grid = (n_rows // tn,)

    in_item = jnp.dtype(heads.dtype).itemsize
    out_item = jnp.dtype(out_dtype).itemsize
    w_item = jnp.dtype(matmul_dtype).itemsize
    const_bytes = 3 * D * D * w_item + 4 * D * 4

    # Rough VMEM budget: double-buffered heads/output blocks, single-buffered
    # constants, the f32 upcast of the heads block, plus ~14 f32 (tn, D) live
    # temporaries (covers the bf16 copies of avg/mx/g and the pre-add dot results).
    vmem_est = (2 * H * tn * D * in_item          # heads block, double-buffered
                + 2 * tn * D * out_item           # output block, double-buffered
                + const_bytes                     # weights / packed vectors
                + H * tn * D * 4                  # f32 upcast of the heads block
                + 14 * tn * D * 4)                # other f32 intermediates

    # Generation-aware scoped-VMEM cap: stay well under v7x's 64 MiB per-TC VMEM,
    # but allow larger tiles on v5e/v6e (128 MiB physical).
    try:
        vmem_cap = int(pltpu.get_tpu_info().vmem_capacity_bytes)
    except Exception:
        vmem_cap = 64 << 20                       # conservative (v7x per-TC)
    limit_cap = (40 << 20) if vmem_cap <= (64 << 20) else (96 << 20)

    compiler_kwargs = dict(dimension_semantics=("parallel",))
    if vmem_est > (16 << 20):                     # only raise past v5e's default
        compiler_kwargs["vmem_limit_bytes"] = min(int(vmem_est * 1.5), limit_cap)

    # Cost hint for XLA's scheduler around this memory-bound custom call.
    cost = pl.CostEstimate(
        flops=6 * n_rows * D * D,                          # 2x (2D->D) + (D->D) matmuls
        transcendentals=3 * n_rows * D,                    # erf + exp(sigmoid) (+rsqrt)
        bytes_accessed=H * n_rows * D * in_item + n_rows * D * out_item + const_bytes,
    )

    # Constant operands: index_map never changes, so a single buffer suffices.
    def const_spec(a):
        return pl.BlockSpec(a.shape, lambda i: (0, 0), pipeline_mode=pl.Buffered(1))

    out = pl.pallas_call(
        _gate_fusion_kernel,
        out_shape=jax.ShapeDtypeStruct((n_rows, D), out_dtype),
        grid_spec=pltpu.PrefetchScalarGridSpec(
            num_scalar_prefetch=0,
            grid=grid,
            in_specs=[
                pl.BlockSpec((H, tn, D), lambda i: (0, i, 0)),   # heads
                const_spec(w1a),                                  # W1[:D]          (D, D)
                const_spec(w1b),                                  # W1[D:]          (D, D)
                const_spec(vecs),                                 # b1/gamma/beta/b2 (4, D)
                const_spec(w2c),                                  # W2              (D, D)
            ],
            out_specs=pl.BlockSpec((tn, D), lambda i: (i, 0)),
        ),
        compiler_params=pltpu.CompilerParams(**compiler_kwargs),
        cost_estimate=cost,
    )(heads, w1a, w1b, vecs, w2c)

    return out[:N] if n_pad else out


def init_params(key, in_dim):
    """Deterministic synthetic parameters (xavier_normal_ on Linear weights)."""
    k1, k2, k3, k4 = jax.random.split(key, 4)
    d = in_dim

    def xavier_normal(k, fan_in, fan_out):
        std = math.sqrt(2.0 / (fan_in + fan_out))
        # torch weight is (out, in); we store (in, out) for x @ W.
        return (std * jax.random.normal(k, (fan_in, fan_out))).astype(jnp.float32)

    w1 = xavier_normal(k1, 2 * d, d)
    b1 = (0.01 * jax.random.normal(k2, (1, d))).astype(jnp.float32)
    gamma = jnp.ones((1, d), jnp.float32)
    beta = jnp.zeros((1, d), jnp.float32)
    w2 = xavier_normal(k3, d, d)
    b2 = (0.01 * jax.random.normal(k4, (1, d))).astype(jnp.float32)
    return (w1, b1, gamma, beta, w2, b2)


def gate_fusion_ref(heads, params):
    """Pure-JAX f32 reference mirroring the PyTorch forward (eval mode)."""
    w1, b1, gamma, beta, w2, b2 = params
    heads = heads.astype(jnp.float32)
    avg = jnp.mean(heads, axis=0)
    mx = jnp.max(heads, axis=0)
    cat = jnp.concatenate([avg, mx], axis=-1)
    h = cat @ w1 + b1
    mu = jnp.mean(h, axis=-1, keepdims=True)
    var = jnp.mean(jnp.square(h - mu), axis=-1, keepdims=True)
    hn = (h - mu) * jax.lax.rsqrt(var + 1e-5) * gamma + beta
    g = 0.5 * hn * (1.0 + jax.lax.erf(hn / math.sqrt(2.0)))
    gate = jax.nn.sigmoid(g @ w2 + b2)
    return gate * avg + (1.0 - gate) * mx


if __name__ == "__main__":
    # Small deterministic test: 4 heads, 1024 rows, in_dim=128 -> row tile 256, grid (4,)
    # (>= 4 steps keeps both v7x TensorCores pipelined).
    H, N, D = 4, 1024, 128
    key = jax.random.PRNGKey(0)
    kx, kp = jax.random.split(key)

    heads = jax.random.normal(kx, (H, N, D), dtype=jnp.float32)
    params = init_params(kp, D)

    out = gate_fusion(heads, params)
    out = jax.block_until_ready(out)

    ref = gate_fusion_ref(heads, params)
    assert out.shape == (N, D)
    max_err = float(jnp.max(jnp.abs(out.astype(jnp.float32) - ref)))
    # bf16 heads + bf16 MXU operands vs. the f32 reference -> relaxed tolerance.
    assert jnp.allclose(out.astype(jnp.float32), ref, atol=1e-1, rtol=1e-1), \
        f"max abs err {max_err}"

    print("KERNEL_OK")
</pallas_src>

<mosaic_0001>
module attributes {stable_mosaic.version = 11 : i64} {
  func.func @_gate_fusion_kernel(%arg0: i32, %arg1: memref<4x256x128xbf16, #tpu.memory_space<vmem>>, %arg2: memref<128x128xbf16, #tpu.memory_space<vmem>>, %arg3: memref<128x128xbf16, #tpu.memory_space<vmem>>, %arg4: memref<4x128xf32, #tpu.memory_space<vmem>>, %arg5: memref<128x128xbf16, #tpu.memory_space<vmem>>, %arg6: memref<256x128xf32, #tpu.memory_space<vmem>>) attributes {dimension_semantics = [#tpu.dimension_semantics<parallel>], iteration_bounds = array<i64: 4>, scalar_prefetch = 0 : i64, scratch_operands = 0 : i64, tpu.core_type = #tpu.core_type<tc>, window_params = [{transform_indices = @transform_0, window_bounds = array<i64: 4, 256, 128>}, {pipeline_mode = #tpu.pipeline_mode<synchronous>, transform_indices = @transform_1, window_bounds = array<i64: 128, 128>}, {pipeline_mode = #tpu.pipeline_mode<synchronous>, transform_indices = @transform_2, window_bounds = array<i64: 128, 128>}, {pipeline_mode = #tpu.pipeline_mode<synchronous>, transform_indices = @transform_3, window_bounds = array<i64: 4, 128>}, {pipeline_mode = #tpu.pipeline_mode<synchronous>, transform_indices = @transform_4, window_bounds = array<i64: 128, 128>}, {transform_indices = @transform_5, window_bounds = array<i64: 256, 128>}]} {
    %c0 = arith.constant 0 : index
    %c0_0 = arith.constant 0 : index
    %c0_1 = arith.constant 0 : index
    %0 = vector.load %arg1[%c0, %c0_0, %c0_1] : memref<4x256x128xbf16, #tpu.memory_space<vmem>>, vector<4x256x128xbf16>
    %1 = arith.extf %0 : vector<4x256x128xbf16> to vector<4x256x128xf32>
    %cst = arith.constant dense<0.000000e+00> : vector<256x128xf32>
    %2 = vector.multi_reduction <add>, %1, %cst [0] : vector<4x256x128xf32> to vector<256x128xf32>
    %cst_2 = arith.constant 4.000000e+00 : f32
    %3 = vector.broadcast %cst_2 : f32 to vector<256x128xf32>
    %4 = arith.divf %2, %3 : vector<256x128xf32>
    %cst_3 = arith.constant dense<0xFF800000> : vector<256x128xf32>
    %5 = vector.multi_reduction <maximumf>, %1, %cst_3 [0] : vector<4x256x128xf32> to vector<256x128xf32>
    %c0_4 = arith.constant 0 : index
    %c0_5 = arith.constant 0 : index
    %6 = vector.load %arg4[%c0_4, %c0_5] : memref<4x128xf32, #tpu.memory_space<vmem>>, vector<4x128xf32>
    %7 = vector.extract_strided_slice %6 {offsets = [0, 0], sizes = [1, 128], strides = [1, 1]} : vector<4x128xf32> to vector<1x128xf32>
    %8 = vector.extract_strided_slice %6 {offsets = [1, 0], sizes = [1, 128], strides = [1, 1]} : vector<4x128xf32> to vector<1x128xf32>
    %9 = vector.extract_strided_slice %6 {offsets = [2, 0], sizes = [1, 128], strides = [1, 1]} : vector<4x128xf32> to vector<1x128xf32>
    %10 = vector.extract_strided_slice %6 {offsets = [3, 0], sizes = [1, 128], strides = [1, 1]} : vector<4x128xf32> to vector<1x128xf32>
    %11 = arith.truncf %4 : vector<256x128xf32> to vector<256x128xbf16>
    %c0_6 = arith.constant 0 : index
    %c0_7 = arith.constant 0 : index
    %12 = vector.load %arg2[%c0_6, %c0_7] : memref<128x128xbf16, #tpu.memory_space<vmem>>, vector<128x128xbf16>
    %cst_8 = arith.constant dense<0.000000e+00> : vector<256x128xf32>
    %13 = tpu.matmul %11, %12, %cst_8 {dimension_numbers = #tpu.dot_dimension_numbers<[1], [0], [0], [1], [0, 0, 1, 1], [], []>} : vector<256x128xbf16>, vector<128x128xbf16>, vector<256x128xf32> -> vector<256x128xf32>
    %14 = arith.truncf %5 : vector<256x128xf32> to vector<256x128xbf16>
    %c0_9 = arith.constant 0 : index
    %c0_10 = arith.constant 0 : index
    %15 = vector.load %arg3[%c0_9, %c0_10] : memref<128x128xbf16, #tpu.memory_space<vmem>>, vector<128x128xbf16>
    %cst_11 = arith.constant dense<0.000000e+00> : vector<256x128xf32>
    %16 = tpu.matmul %14, %15, %cst_11 {dimension_numbers = #tpu.dot_dimension_numbers<[1], [0], [0], [1], [0, 0, 1, 1], [], []>} : vector<256x128xbf16>, vector<128x128xbf16>, vector<256x128xf32> -> vector<256x128xf32>
    %17 = arith.addf %13, %16 : vector<256x128xf32>
    %18 = vector.broadcast %7 : vector<1x128xf32> to vector<256x128xf32>
    %19 = arith.addf %17, %18 : vector<256x128xf32>
    %cst_12 = arith.constant dense<0.000000e+00> : vector<256xf32>
    %20 = vector.multi_reduction <add>, %19, %cst_12 [1] : vector<256x128xf32> to vector<256xf32>
    %21 = vector.shape_cast %20 : vector<256xf32> to vector<256x1xf32>
    %cst_13 = arith.constant 1.280000e+02 : f32
    %22 = vector.broadcast %cst_13 : f32 to vector<256x1xf32>
    %23 = arith.divf %21, %22 : vector<256x1xf32>
    %24 = vector.broadcast %23 : vector<256x1xf32> to vector<256x128xf32>
    %25 = arith.subf %19, %24 : vector<256x128xf32>
    %26 = arith.mulf %25, %25 : vector<256x128xf32>
    %cst_14 = arith.constant dense<0.000000e+00> : vector<256xf32>
    %27 = vector.multi_reduction <add>, %26, %cst_14 [1] : vector<256x128xf32> to vector<256xf32>
    %28 = vector.shape_cast %27 : vector<256xf32> to vector<256x1xf32>
    %cst_15 = arith.constant 1.280000e+02 : f32
    %29 = vector.broadcast %cst_15 : f32 to vector<256x1xf32>
    %30 = arith.divf %28, %29 : vector<256x1xf32>
    %31 = vector.broadcast %23 : vector<256x1xf32> to vector<256x128xf32>
    %32 = arith.subf %19, %31 : vector<256x128xf32>
    %cst_16 = arith.constant 9.99999974E-6 : f32
    %33 = vector.broadcast %cst_16 : f32 to vector<256x1xf32>
    %34 = arith.addf %30, %33 : vector<256x1xf32>
    %35 = math.rsqrt %34 : vector<256x1xf32>
    %36 = vector.broadcast %35 : vector<256x1xf32> to vector<256x128xf32>
    %37 = arith.mulf %32, %36 : vector<256x128xf32>
    %38 = vector.broadcast %8 : vector<1x128xf32> to vector<256x128xf32>
    %39 = arith.mulf %37, %38 : vector<256x128xf32>
    %40 = vector.broadcast %9 : vector<1x128xf32> to vector<256x128xf32>
    %41 = arith.addf %39, %40 : vector<256x128xf32>
    %cst_17 = arith.constant 5.000000e-01 : f32
    %42 = vector.broadcast %cst_17 : f32 to vector<256x128xf32>
    %43 = arith.mulf %42, %41 : vector<256x128xf32>
    %cst_18 = arith.constant 0.707106769 : f32
    %44 = vector.broadcast %cst_18 : f32 to vector<256x128xf32>
    %45 = arith.mulf %41, %44 : vector<256x128xf32>
    %46 = math.erf %45 : vector<256x128xf32>
    %cst_19 = arith.constant 1.000000e+00 : f32
    %47 = vector.broadcast %cst_19 : f32 to vector<256x128xf32>
    %48 = arith.addf %47, %46 : vector<256x128xf32>
    %49 = arith.mulf %43, %48 : vector<256x128xf32>
    %50 = arith.truncf %49 : vector<256x128xf32> to vector<256x128xbf16>
    %c0_20 = arith.constant 0 : index
    %c0_21 = arith.constant 0 : index
    %51 = vector.load %arg5[%c0_20, %c0_21] : memref<128x128xbf16, #tpu.memory_space<vmem>>, vector<128x128xbf16>
    %cst_22 = arith.constant dense<0.000000e+00> : vector<256x128xf32>
    %52 = tpu.matmul %50, %51, %cst_22 {dimension_numbers = #tpu.dot_dimension_numbers<[1], [0], [0], [1], [0, 0, 1, 1], [], []>} : vector<256x128xbf16>, vector<128x128xbf16>, vector<256x128xf32> -> vector<256x128xf32>
    %53 = vector.broadcast %10 : vector<1x128xf32> to vector<256x128xf32>
    %54 = arith.addf %52, %53 : vector<256x128xf32>
    %55 = arith.negf %54 : vector<256x128xf32>
    %56 = math.exp %55 : vector<256x128xf32>
    %cst_23 = arith.constant 1.000000e+00 : f32
    %57 = vector.broadcast %cst_23 : f32 to vector<256x128xf32>
    %58 = arith.addf %57, %56 : vector<256x128xf32>
    %59 = arith.divf %57, %58 : vector<256x128xf32>
    %60 = arith.subf %4, %5 : vector<256x128xf32>
    %61 = arith.mulf %59, %60 : vector<256x128xf32>
    %62 = arith.addf %5, %61 : vector<256x128xf32>
    %c0_24 = arith.constant 0 : index
    %c0_25 = arith.constant 0 : index
    %63 = vector.load %arg6[%c0_24, %c0_25] : memref<256x128xf32, #tpu.memory_space<vmem>>, vector<256x128xf32>
    tpu.vector_store %arg6[%c0_24, %c0_25], %62 {strides = array<i32>} : memref<256x128xf32, #tpu.memory_space<vmem>>, vector<256x128xf32>,
    return
  }
  func.func @transform_0(%arg0: i32) -> (i32, i32, i32) {
    %c0_i32 = arith.constant 0 : i32
    %c0_i32_0 = arith.constant 0 : i32
    %c0_i32_1 = arith.constant 0 : i32
    return %c0_i32, %arg0, %c0_i32_0 : i32, i32, i32
  }
  func.func @transform_1(%arg0: i32) -> (i32, i32) {
    %c0_i32 = arith.constant 0 : i32
    %c0_i32_0 = arith.constant 0 : i32
    %c0_i32_1 = arith.constant 0 : i32
    return %c0_i32, %c0_i32_0 : i32, i32
  }
  func.func @transform_2(%arg0: i32) -> (i32, i32) {
    %c0_i32 = arith.constant 0 : i32
    %c0_i32_0 = arith.constant 0 : i32
    %c0_i32_1 = arith.constant 0 : i32
    return %c0_i32, %c0_i32_0 : i32, i32
  }
  func.func @transform_3(%arg0: i32) -> (i32, i32) {
    %c0_i32 = arith.constant 0 : i32
    %c0_i32_0 = arith.constant 0 : i32
    %c0_i32_1 = arith.constant 0 : i32
    return %c0_i32, %c0_i32_0 : i32, i32
  }
  func.func @transform_4(%arg0: i32) -> (i32, i32) {
    %c0_i32 = arith.constant 0 : i32
    %c0_i32_0 = arith.constant 0 : i32
    %c0_i32_1 = arith.constant 0 : i32
    return %c0_i32, %c0_i32_0 : i32, i32
  }
  func.func @transform_5(%arg0: i32) -> (i32, i32) {
    %c0_i32 = arith.constant 0 : i32
    %c0_i32_0 = arith.constant 0 : i32
    return %arg0, %c0_i32 : i32, i32
  }
}

</mosaic_0001>

<llo_original>
// kernel: tpu_custom_call.1
$region0: #{tpu_custom_call.1}
  #allocation0 [shape = 'u32[]', space=smem, size = 0x4, offset = 0x4, fixed_abs, tag = 'smem constant byte address 0x4 - core index']
  #allocation1 [shape = 'u32[144,128]{1,0:T(1,128)}', space=vmem, size = 0x12000, scoped, tag = 'internal scratch']
  #allocation11 [shape = 's32[]', space=sflag, size = 0x4, offset = 0, fixed_abs, tag = 'sflag constant byte address 0x0 - dummy sync flag']
  %s0 = inlined_call_operand.hbm [shape: bf16[4,1024,128], index: 0, kind: input, shape index: {}]
  %s1 = inlined_call_operand.hbm [shape: bf16[128,128], index: 1, kind: input, shape index: {}]
  %s2 = inlined_call_operand.hbm [shape: bf16[128,128], index: 2, kind: input, shape index: {}]
  %s3 = inlined_call_operand.vmem [shape: f32[4,128], index: 3, kind: input, shape index: {}]
  %s4 = inlined_call_operand.hbm [shape: bf16[128,128], index: 4, kind: input, shape index: {}]
  %s5 = inlined_call_operand.hbm [shape: f32[1024,128], index: 5, kind: output, shape index: {}]
  %s6 = sld [smem:[#allocation0]]
  $region69: #{tpu_custom_call.1} parent=0
    _
  %s8 = ssub.s32 1, %s6
  %s9 = scalar_select 0, %s8, %s6
  $region1: #{tpu_custom_call.1} parent=0
    #allocation2 [shape = 'u8[524288]{0}', space=vmem, size = 0x80000, scoped, tag = 'input window, operand 0']
    #allocation3 [shape = 's32[2]{0}', space=sflag, size = 0x8, scoped, tag = 'scoped memory for tpu_custom_call.1']
    #allocation4 [shape = 's32[2]{0}', space=sflag, size = 0x8, scoped, tag = 'scoped memory for tpu_custom_call.1']
    #allocation5 [shape = 'u8[32768]{0}', space=vmem, size = 0x8000, scoped, tag = 'input window, operand 1, single buffered']
    #allocation6 [shape = 's32[1]{0}', space=sflag, size = 0x4, scoped, tag = 'scoped memory for tpu_custom_call.1']
    #allocation7 [shape = 'u8[32768]{0}', space=vmem, size = 0x8000, scoped, tag = 'input window, operand 2, single buffered']
    #allocation8 [shape = 'u8[32768]{0}', space=vmem, size = 0x8000, scoped, tag = 'input window, operand 4, single buffered']
    #allocation9 [shape = 's32[1]{0}', space=sflag, size = 0x4, scoped, tag = 'scoped memory for tpu_custom_call.1']
    #allocation10 [shape = 'u8[262144]{0}', space=vmem, size = 0x40000, scoped, tag = 'output window, operand 0']
    %10 = vsyncpa [#allocation3], 0
    %s11 = scalar_lea.sflag [#allocation3], 1
    %12 = vsyncpa %s11, 0
    %13 = vsyncpa [#allocation6], 0
    %14 = vsyncpa [#allocation9], 0
    %15 = vsyncpa [#allocation4], 0
    %s16 = scalar_lea.sflag [#allocation4], 1
    %17 = vsyncpa %s16, 0
    loop: start=0, step=1, limit=6
    $region2: #{tpu_custom_call.1} parent=1 // loop_pre_header
      _
    $region3: #{tpu_custom_call.1} parent=1 // loop_header
      %s19 = sphi 0, %s23
      %p20 = scmp.ge.s32.totalorder %s19, 6
      %s29 = sphi 0, %s31
      %s32 = sphi 0, %s29
      %s33 = sphi 0, %s32
      %s49 = sphi 0, %s33
      %s53 = sphi 0, %s53
      %s55 = sphi 0, %s53
      %s56 = sphi 0, %s55
      %s70 = sphi 0, %s56
      %s74 = sphi 0, %s74
      %s76 = sphi 0, %s74
      %s77 = sphi 0, %s76
      %s91 = sphi 0, %s77
      %s95 = sphi 0, %s95
      %s97 = sphi 0, %s95
      %s98 = sphi 0, %s97
      %s112 = sphi 0, %s98
      %s116 = sphi 0, %s116
      %s118 = sphi 0, %s116
      %s119 = sphi 0, %s118
      %s133 = sphi 0, %s119
      %s139 = sphi 0, %s141
      %s142 = sphi 0, %s139
      %s143 = sphi 0, %s142
      %s159 = sphi 0, %s143
    $region4: #{tpu_custom_call.1} parent=1 // loop_header_branch
      %22 = sbr.rel (%p20) target = $region8
    $region5: #{tpu_custom_call.1} parent=1 // loop_body
      %s24 = ssub.s32 %s19, 1
      %s25 = ssub.s32 %s19, 2
      %s26 = sadd.s32 %s19, 1
      %s27 = ssub.s32 %s19, %s26
      %p28 = scmp.eq.s32.totalorder %s27, 0
      %s30 = sadd.s32 %s29, 1
      %s31 = scalar_select %p28, %s29, %s30
      %p34 = pneg %p28
      %p35 = scmp.eq.s32.totalorder %s19, 3
      %p36 = por %p34, %p35
      %p37 = scmp.ne.s32.totalorder %s29, %s32
      %p38 = scmp.eq.s32.totalorder %s19, 0
      %p39 = por %p37, %p38
      %p40 = scmp.ne.s32.totalorder %s29, %s32
      %p41 = scmp.eq.s32.totalorder %s24, 3
      %p42 = por %p40, %p41
      %p43 = scmp.ne.s32.totalorder %s32, %s33
      %p44 = scmp.eq.s32.totalorder %s24, 0
      %p45 = por %p43, %p44
      %p46 = scmp.ne.s32.totalorder %s32, %s33
      %p47 = scmp.eq.s32.totalorder %s25, 3
      %p48 = por %p46, %p47
      %p50 = scmp.ne.s32.totalorder %s33, %s49
      %p51 = scmp.eq.s32.totalorder %s25, 0
      %p52 = por %p50, %p51
      %s54 = sadd.s32 %s53, 1
      %p57 = scmp.eq.s32.totalorder %s19, 3
      %p58 = scmp.ne.s32.totalorder %s53, %s55
      %p59 = scmp.eq.s32.totalorder %s19, 0
      %p60 = por %p58, %p59
      %p61 = scmp.ne.s32.totalorder %s53, %s55
      %p62 = scmp.eq.s32.totalorder %s24, 3
      %p63 = por %p61, %p62
      %p64 = scmp.ne.s32.totalorder %s55, %s56
      %p65 = scmp.eq.s32.totalorder %s24, 0
      %p66 = por %p64, %p65
      %p67 = scmp.ne.s32.totalorder %s55, %s56
      %p68 = scmp.eq.s32.totalorder %s25, 3
      %p69 = por %p67, %p68
      %p71 = scmp.ne.s32.totalorder %s56, %s70
      %p72 = scmp.eq.s32.totalorder %s25, 0
      %p73 = por %p71, %p72
      %s75 = sadd.s32 %s74, 1
      %p78 = scmp.eq.s32.totalorder %s19, 3
      %p79 = scmp.ne.s32.totalorder %s74, %s76
      %p80 = scmp.eq.s32.totalorder %s19, 0
      %p81 = por %p79, %p80
      %p82 = scmp.ne.s32.totalorder %s74, %s76
      %p83 = scmp.eq.s32.totalorder %s24, 3
      %p84 = por %p82, %p83
      %p85 = scmp.ne.s32.totalorder %s76, %s77
      %p86 = scmp.eq.s32.totalorder %s24, 0
      %p87 = por %p85, %p86
      %p88 = scmp.ne.s32.totalorder %s76, %s77
      %p89 = scmp.eq.s32.totalorder %s25, 3
      %p90 = por %p88, %p89
      %p92 = scmp.ne.s32.totalorder %s77, %s91
      %p93 = scmp.eq.s32.totalorder %s25, 0
      %p94 = por %p92, %p93
      %s96 = sadd.s32 %s95, 1
      %p99 = scmp.eq.s32.totalorder %s19, 3
      %p100 = scmp.ne.s32.totalorder %s95, %s97
      %p101 = scmp.eq.s32.totalorder %s19, 0
      %p102 = por %p100, %p101
      %p103 = scmp.ne.s32.totalorder %s95, %s97
      %p104 = scmp.eq.s32.totalorder %s24, 3
      %p105 = por %p103, %p104
      %p106 = scmp.ne.s32.totalorder %s97, %s98
      %p107 = scmp.eq.s32.totalorder %s24, 0
      %p108 = por %p106, %p107
      %p109 = scmp.ne.s32.totalorder %s97, %s98
      %p110 = scmp.eq.s32.totalorder %s25, 3
      %p111 = por %p109, %p110
      %p113 = scmp.ne.s32.totalorder %s98, %s112
      %p114 = scmp.eq.s32.totalorder %s25, 0
      %p115 = por %p113, %p114
      %s117 = sadd.s32 %s116, 1
      %p120 = scmp.eq.s32.totalorder %s19, 3
      %p121 = scmp.ne.s32.totalorder %s116, %s118
      %p122 = scmp.eq.s32.totalorder %s19, 0
      %p123 = por %p121, %p122
      %p124 = scmp.ne.s32.totalorder %s116, %s118
      %p125 = scmp.eq.s32.totalorder %s24, 3
      %p126 = por %p124, %p125
      %p127 = scmp.ne.s32.totalorder %s118, %s119
      %p128 = scmp.eq.s32.totalorder %s24, 0
      %p129 = por %p127, %p128
      %p130 = scmp.ne.s32.totalorder %s118, %s119
      %p131 = scmp.eq.s32.totalorder %s25, 3
      %p132 = por %p130, %p131
      %p134 = scmp.ne.s32.totalorder %s119, %s133
      %p135 = scmp.eq.s32.totalorder %s25, 0
      %p136 = por %p134, %p135
      %s137 = ssub.s32 %s19, %s26
      %p138 = scmp.eq.s32.totalorder %s137, 0
      %s140 = sadd.s32 %s139, 1
      %s141 = scalar_select %p138, %s139, %s140
      %p144 = pneg %p138
      %p145 = scmp.eq.s32.totalorder %s19, 3
      %p146 = por %p144, %p145
      %p147 = scmp.ne.s32.totalorder %s139, %s142
      %p148 = scmp.eq.s32.totalorder %s19, 0
      %p149 = por %p147, %p148
      %p150 = scmp.ne.s32.totalorder %s139, %s142
      %p151 = scmp.eq.s32.totalorder %s24, 3
      %p152 = por %p150, %p151
      %p153 = scmp.ne.s32.totalorder %s142, %s143
      %p154 = scmp.eq.s32.totalorder %s24, 0
      %p155 = por %p153, %p154
      %p156 = scmp.ne.s32.totalorder %s142, %s143
      %p157 = scmp.eq.s32.totalorder %s25, 3
      %p158 = por %p156, %p157
      %p160 = scmp.ne.s32.totalorder %s143, %s159
      %p161 = scmp.eq.s32.totalorder %s25, 0
      %p162 = por %p160, %p161
      %p163 = scmp.le.s32.totalorder 1, %s19
      %p164 = scmp.lt.s32.totalorder %s19, 5
      %p165 = pnand %p163, %p164
      %p166 = pneg %p165
      // Predicated region
      $region9: #{tpu_custom_call.1} parent=5 // pred_check
        _
      $region10: #{tpu_custom_call.1} parent=5 // pred_check_branch
        %168 = sbr.rel (%p165) target = $region12
      $region11: #{tpu_custom_call.1} parent=5 // pred_region
        %s169 = ssub.s32 %s19, 1
        // Predicated region
        $region13: #{tpu_custom_call.1} parent=11 // pred_check
          %p170 = pneg %p66
        $region14: #{tpu_custom_call.1} parent=11 // pred_check_branch
          %172 = sbr.rel (%p170) target = $region16
        $region15: #{tpu_custom_call.1} parent=11 // pred_region
          %s174 = ssub.s32 1024, 1024
          %175 = vsyncadd [#allocation6], %s174
          %s176 = sshll.u32 [#allocation5], 4
          %s177 = int_to_ptr.vmem [resolvable:$true] %s176
          %182 = dma.hbm_to_vmem [thread:$0]  %s1, 1024, %s177, [#allocation6], 64, 64, 4
        $region16: #{tpu_custom_call.1} parent=11 // pred_fallthru
          _
        // Predicated region
        $region17: #{tpu_custom_call.1} parent=11 // pred_check
          %p183 = pneg %p87
        $region18: #{tpu_custom_call.1} parent=11 // pred_check_branch
          %185 = sbr.rel (%p183) target = $region20
        $region19: #{tpu_custom_call.1} parent=11 // pred_region
          %s187 = ssub.s32 1024, 1024
          %188 = vsyncadd [#allocation6], %s187
          %s189 = sshll.u32 [#allocation7], 4
          %s190 = int_to_ptr.vmem [resolvable:$true] %s189
          %195 = dma.hbm_to_vmem [thread:$0]  %s2, 1024, %s190, [#allocation6], 64, 64, 4
        $region20: #{tpu_custom_call.1} parent=11 // pred_fallthru
          _
        // Predicated region
        $region21: #{tpu_custom_call.1} parent=11 // pred_check
          %p196 = pneg %p108
        $region22: #{tpu_custom_call.1} parent=11 // pred_check_branch
          %198 = sbr.rel (%p196) target = $region24
        $region23: #{tpu_custom_call.1} parent=11 // pred_region
          _
        $region24: #{tpu_custom_call.1} parent=11 // pred_fallthru
          _
        // Predicated region
        $region25: #{tpu_custom_call.1} parent=11 // pred_check
          %p199 = pneg %p129
        $region26: #{tpu_custom_call.1} parent=11 // pred_check_branch
          %201 = sbr.rel (%p199) target = $region28
        $region27: #{tpu_custom_call.1} parent=11 // pred_region
          %s203 = ssub.s32 1024, 1024
          %204 = vsyncadd [#allocation9], %s203
          %s205 = sshll.u32 [#allocation8], 4
          %s206 = int_to_ptr.vmem [resolvable:$true] %s205
          %211 = dma.hbm_to_vmem [thread:$0]  %s4, 1024, %s206, [#allocation9], 64, 64, 4
        $region28: #{tpu_custom_call.1} parent=11 // pred_fallthru
          _
      $region12: #{tpu_custom_call.1} parent=5 // pred_fallthru
        _
      %p212 = scmp.lt.s32.totalorder %s19, 4
      // Predicated region
      $region29: #{tpu_custom_call.1} parent=5 // pred_check
        %p213 = pneg %p212
      $region30: #{tpu_custom_call.1} parent=5 // pred_check_branch
        %215 = sbr.rel (%p213) target = $region32
      $region31: #{tpu_custom_call.1} parent=5 // pred_region
        // Predicated region
        $region33: #{tpu_custom_call.1} parent=31 // pred_check
          %p216 = pneg %p39
        $region34: #{tpu_custom_call.1} parent=31 // pred_check_branch
          %218 = sbr.rel (%p216) target = $region36
        $region35: #{tpu_custom_call.1} parent=31 // pred_region
          #allocation12 [shape = 'u32[6]{0}', space=smem, size = 0x18, scoped, tag = 'DMA stride descriptor']
          %s219 = sand.u32 %s29, 1
          %s220 = scalar_lea.sflag [#allocation3], %s219
          %s221 = sand.u32 %s29, 1
          %s222 = smul.addr %s221, 512
          %s223 = scalar_lea.vmem [#allocation2], %s222
          %s224 = smul.u32 32, %s19
          %s226 = ssub.s32 8192, 8192
          %227 = vsyncadd %s220, %s226
          %s228 = smul.addr %s224, 64
          %s229 = scalar_lea.hbm %s0, %s228
          %s231 = sshll.u32 1, 14
          %s232 = sxor.u32 4294967295, %s231
          %s234 = sld [smem:[#allocation0]]
          %s235 = sadd.s32 2, %s234
          %s237 = sshll.u32 7, 26
          %s238 = sxor.u32 4294967295, %s237
          %s239 = sand.u32 0, %s238
          %s240 = sshll.u32 %s235, 26
          %s241 = sor.u32 %s239, %s240
          %s242 = sshll.u32 %s223, 4
          %s243 = int_to_ptr.vmem [resolvable:$true] %s242
          %249 = sst [smem:[#allocation12]] 8192
          %s250 = scalar_lea.smem [#allocation12], 1
          %251 = sst [smem:[%s250]] 2048
          %s252 = scalar_lea.smem [#allocation12], 2
          %253 = sst [smem:[%s252]] 32
          %s254 = scalar_lea.smem [#allocation12], 3
          %255 = sst [smem:[%s254]] 64
          %s256 = scalar_lea.smem [#allocation12], 4
          %257 = sst [smem:[%s256]] 64
          %s258 = scalar_lea.smem [#allocation12], 5
          %259 = sst [smem:[%s258]] 4
          %261 = dma.general %s229, 8192, %s243, %s220, [#allocation11], [#allocation12], %s241, 0
        $region36: #{tpu_custom_call.1} parent=31 // pred_fallthru
          _
      $region32: #{tpu_custom_call.1} parent=5 // pred_fallthru
        _
      %p262 = scmp.le.s32.totalorder 1, %s19
      %p263 = scmp.lt.s32.totalorder %s19, 5
      %p264 = pnand %p262, %p263
      %p265 = pneg %p264
      // Predicated region
      $region37: #{tpu_custom_call.1} parent=5 // pred_check
        _
      $region38: #{tpu_custom_call.1} parent=5 // pred_check_branch
        %267 = sbr.rel (%p264) target = $region40
      $region39: #{tpu_custom_call.1} parent=5 // pred_region
        %s268 = ssub.s32 %s19, 1
        %s269 = sand.u32 %s32, 1
        %s270 = scalar_lea.sflag [#allocation3], %s269
        %s271 = sand.u32 %s32, 1
        %s272 = smul.addr %s271, 512
        %s273 = scalar_lea.vmem [#allocation2], %s272
        // Predicated region
        $region41: #{tpu_custom_call.1} parent=39 // pred_check
          %p274 = pneg %p45
        $region42: #{tpu_custom_call.1} parent=39 // pred_check_branch
          %276 = sbr.rel (%p274) target = $region44
        $region43: #{tpu_custom_call.1} parent=39 // pred_region
          %277 = dma.done %s270, 8192
        $region44: #{tpu_custom_call.1} parent=39 // pred_fallthru
          _
        // Predicated region
        $region45: #{tpu_custom_call.1} parent=39 // pred_check
          %p278 = pneg %p66
        $region46: #{tpu_custom_call.1} parent=39 // pred_check_branch
          %280 = sbr.rel (%p278) target = $region48
        $region47: #{tpu_custom_call.1} parent=39 // pred_region
          %281 = dma.done [#allocation6], 1024
        $region48: #{tpu_custom_call.1} parent=39 // pred_fallthru
          _
        // Predicated region
        $region49: #{tpu_custom_call.1} parent=39 // pred_check
          %p282 = pneg %p87
        $region50: #{tpu_custom_call.1} parent=39 // pred_check_branch
          %284 = sbr.rel (%p282) target = $region52
        $region51: #{tpu_custom_call.1} parent=39 // pred_region
          %285 = dma.done [#allocation6], 1024
        $region52: #{tpu_custom_call.1} parent=39 // pred_fallthru
          _
        // Predicated region
        $region53: #{tpu_custom_call.1} parent=39 // pred_check
          %p286 = pneg %p129
        $region54: #{tpu_custom_call.1} parent=39 // pred_check_branch
          %288 = sbr.rel (%p286) target = $region56
        $region55: #{tpu_custom_call.1} parent=39 // pred_region
          %289 = dma.done [#allocation9], 1024
        $region56: #{tpu_custom_call.1} parent=39 // pred_fallthru
          _
        %s290 = sand.u32 %s32, 1
        %s291 = scalar_lea.sflag [#allocation3], %s290
        %s292 = sand.u32 %s32, 1
        %s293 = smul.addr %s292, 512
        %s294 = scalar_lea.vmem [#allocation2], %s293
        %p295 = pneg %p45
        %p296 = pneg %p42
        %p297 = pneg %p66
        %p298 = pneg %p63
        %p299 = pneg %p87
        %p300 = pneg %p84
        %p301 = pneg %p108
        %p302 = pneg %p105
        %p303 = pneg %p129
        %p304 = pneg %p126
        %p305 = pneg %p155
        %p306 = pneg %p152
        %s307 = sand.u32 %s142, 1
        %s308 = scalar_lea.sflag [#allocation4], %s307
        %s309 = sand.u32 %s142, 1
        %s310 = smul.addr %s309, 256
        %s311 = scalar_lea.vmem [#allocation10], %s310
        %s312 = smul.u32 32, %s24
        %s313 = smul.u32 32, %s24
        %v315 = vld [vmem:[%s273] sm:$0xf]
        %v316 = vld [vmem:[%s273 + $0x4] sm:$0xf]
        %v317 = vld [vmem:[%s273 + $0x8] sm:$0xf]
        %v318 = vld [vmem:[%s273 + $0xc] sm:$0xf]
        %v319 = vld [vmem:[%s273 + $0x10] sm:$0xf]
        %v320 = vld [vmem:[%s273 + $0x14] sm:$0xf]
        %v321 = vld [vmem:[%s273 + $0x18] sm:$0xf]
        %v322 = vld [vmem:[%s273 + $0x1c] sm:$0xf]
        %v323 = vld [vmem:[%s273 + $0x20] sm:$0xf]
        %v324 = vld [vmem:[%s273 + $0x24] sm:$0xf]
        %v325 = vld [vmem:[%s273 + $0x28] sm:$0xf]
        %v326 = vld [vmem:[%s273 + $0x2c] sm:$0xf]
        %v327 = vld [vmem:[%s273 + $0x30] sm:$0xf]
        %v328 = vld [vmem:[%s273 + $0x34] sm:$0xf]
        %v329 = vld [vmem:[%s273 + $0x38] sm:$0xf]
        %v330 = vld [vmem:[%s273 + $0x3c] sm:$0xf]
        %v331 = vld [vmem:[%s273 + $0x40] sm:$0xf]
        %v332 = vld [vmem:[%s273 + $0x44] sm:$0xf]
        %v333 = vld [vmem:[%s273 + $0x48] sm:$0xf]
        %v334 = vld [vmem:[%s273 + $0x4c] sm:$0xf]
        %v335 = vld [vmem:[%s273 + $0x50] sm:$0xf]
        %v336 = vld [vmem:[%s273 + $0x54] sm:$0xf]
        %v337 = vld [vmem:[%s273 + $0x58] sm:$0xf]
        %v338 = vld [vmem:[%s273 + $0x5c] sm:$0xf]
        %v339 = vld [vmem:[%s273 + $0x60] sm:$0xf]
        %v340 = vld [vmem:[%s273 + $0x64] sm:$0xf]
        %v341 = vld [vmem:[%s273 + $0x68] sm:$0xf]
        %v342 = vld [vmem:[%s273 + $0x6c] sm:$0xf]
        %v343 = vld [vmem:[%s273 + $0x70] sm:$0xf]
        %v344 = vld [vmem:[%s273 + $0x74] sm:$0xf]
        %v345 = vld [vmem:[%s273 + $0x78] sm:$0xf]
        %v346 = vld [vmem:[%s273 + $0x7c] sm:$0xf]
        %v347 = vld [vmem:[%s273 + $0x80] sm:$0xf]
        %v348 = vld [vmem:[%s273 + $0x84] sm:$0xf]
        %v349 = vld [vmem:[%s273 + $0x88] sm:$0xf]
        %v350 = vld [vmem:[%s273 + $0x8c] sm:$0xf]
        %v351 = vld [vmem:[%s273 + $0x90] sm:$0xf]
        %v352 = vld [vmem:[%s273 + $0x94] sm:$0xf]
        %v353 = vld [vmem:[%s273 + $0x98] sm:$0xf]
        %v354 = vld [vmem:[%s273 + $0x9c] sm:$0xf]
        %v355 = vld [vmem:[%s273 + $0xa0] sm:$0xf]
        %v356 = vld [vmem:[%s273 + $0xa4] sm:$0xf]
        %v357 = vld [vmem:[%s273 + $0xa8] sm:$0xf]
        %v358 = vld [vmem:[%s273 + $0xac] sm:$0xf]
        %v359 = vld [vmem:[%s273 + $0xb0] sm:$0xf]
        %v360 = vld [vmem:[%s273 + $0xb4] sm:$0xf]
        %v361 = vld [vmem:[%s273 + $0xb8] sm:$0xf]
        %v362 = vld [vmem:[%s273 + $0xbc] sm:$0xf]
        %v363 = vld [vmem:[%s273 + $0xc0] sm:$0xf]
        %v364 = vld [vmem:[%s273 + $0xc4] sm:$0xf]
        %v365 = vld [vmem:[%s273 + $0xc8] sm:$0xf]
        %v366 = vld [vmem:[%s273 + $0xcc] sm:$0xf]
        %v367 = vld [vmem:[%s273 + $0xd0] sm:$0xf]
        %v368 = vld [vmem:[%s273 + $0xd4] sm:$0xf]
        %v369 = vld [vmem:[%s273 + $0xd8] sm:$0xf]
        %v370 = vld [vmem:[%s273 + $0xdc] sm:$0xf]
        %v371 = vld [vmem:[%s273 + $0xe0] sm:$0xf]
        %v372 = vld [vmem:[%s273 + $0xe4] sm:$0xf]
        %v373 = vld [vmem:[%s273 + $0xe8] sm:$0xf]
        %v374 = vld [vmem:[%s273 + $0xec] sm:$0xf]
        %v375 = vld [vmem:[%s273 + $0xf0] sm:$0xf]
        %v376 = vld [vmem:[%s273 + $0xf4] sm:$0xf]
        %v377 = vld [vmem:[%s273 + $0xf8] sm:$0xf]
        %v378 = vld [vmem:[%s273 + $0xfc] sm:$0xf]
        %v379 = vld [vmem:[%s273 + $0x100] sm:$0xf]
        %v380 = vld [vmem:[%s273 + $0x104] sm:$0xf]
        %v381 = vld [vmem:[%s273 + $0x108] sm:$0xf]
        %v382 = vld [vmem:[%s273 + $0x10c] sm:$0xf]
        %v383 = vld [vmem:[%s273 + $0x110] sm:$0xf]
        %v384 = vld [vmem:[%s273 + $0x114] sm:$0xf]
        %v385 = vld [vmem:[%s273 + $0x118] sm:$0xf]
        %v386 = vld [vmem:[%s273 + $0x11c] sm:$0xf]
        %v387 = vld [vmem:[%s273 + $0x120] sm:$0xf]
        %v388 = vld [vmem:[%s273 + $0x124] sm:$0xf]
        %v389 = vld [vmem:[%s273 + $0x128] sm:$0xf]
        %v390 = vld [vmem:[%s273 + $0x12c] sm:$0xf]
        %v391 = vld [vmem:[%s273 + $0x130] sm:$0xf]
        %v392 = vld [vmem:[%s273 + $0x134] sm:$0xf]
        %v393 = vld [vmem:[%s273 + $0x138] sm:$0xf]
        %v394 = vld [vmem:[%s273 + $0x13c] sm:$0xf]
        %v395 = vld [vmem:[%s273 + $0x140] sm:$0xf]
        %v396 = vld [vmem:[%s273 + $0x144] sm:$0xf]
        %v397 = vld [vmem:[%s273 + $0x148] sm:$0xf]
        %v398 = vld [vmem:[%s273 + $0x14c] sm:$0xf]
        %v399 = vld [vmem:[%s273 + $0x150] sm:$0xf]
        %v400 = vld [vmem:[%s273 + $0x154] sm:$0xf]
        %v401 = vld [vmem:[%s273 + $0x158] sm:$0xf]
        %v402 = vld [vmem:[%s273 + $0x15c] sm:$0xf]
        %v403 = vld [vmem:[%s273 + $0x160] sm:$0xf]
        %v404 = vld [vmem:[%s273 + $0x164] sm:$0xf]
        %v405 = vld [vmem:[%s273 + $0x168] sm:$0xf]
        %v406 = vld [vmem:[%s273 + $0x16c] sm:$0xf]
        %v407 = vld [vmem:[%s273 + $0x170] sm:$0xf]
        %v408 = vld [vmem:[%s273 + $0x174] sm:$0xf]
        %v409 = vld [vmem:[%s273 + $0x178] sm:$0xf]
        %v410 = vld [vmem:[%s273 + $0x17c] sm:$0xf]
        %v411 = vld [vmem:[%s273 + $0x180] sm:$0xf]
        %v412 = vld [vmem:[%s273 + $0x184] sm:$0xf]
        %v413 = vld [vmem:[%s273 + $0x188] sm:$0xf]
        %v414 = vld [vmem:[%s273 + $0x18c] sm:$0xf]
        %v415 = vld [vmem:[%s273 + $0x190] sm:$0xf]
        %v416 = vld [vmem:[%s273 + $0x194] sm:$0xf]
        %v417 = vld [vmem:[%s273 + $0x198] sm:$0xf]
        %v418 = vld [vmem:[%s273 + $0x19c] sm:$0xf]
        %v419 = vld [vmem:[%s273 + $0x1a0] sm:$0xf]
        %v420 = vld [vmem:[%s273 + $0x1a4] sm:$0xf]
        %v421 = vld [vmem:[%s273 + $0x1a8] sm:$0xf]
        %v422 = vld [vmem:[%s273 + $0x1ac] sm:$0xf]
        %v423 = vld [vmem:[%s273 + $0x1b0] sm:$0xf]
        %v424 = vld [vmem:[%s273 + $0x1b4] sm:$0xf]
        %v425 = vld [vmem:[%s273 + $0x1b8] sm:$0xf]
        %v426 = vld [vmem:[%s273 + $0x1bc] sm:$0xf]
        %v427 = vld [vmem:[%s273 + $0x1c0] sm:$0xf]
        %v428 = vld [vmem:[%s273 + $0x1c4] sm:$0xf]
        %v429 = vld [vmem:[%s273 + $0x1c8] sm:$0xf]
        %v430 = vld [vmem:[%s273 + $0x1cc] sm:$0xf]
        %v431 = vld [vmem:[%s273 + $0x1d0] sm:$0xf]
        %v432 = vld [vmem:[%s273 + $0x1d4] sm:$0xf]
        %v433 = vld [vmem:[%s273 + $0x1d8] sm:$0xf]
        %v434 = vld [vmem:[%s273 + $0x1dc] sm:$0xf]
        %v435 = vld [vmem:[%s273 + $0x1e0] sm:$0xf]
        %v436 = vld [vmem:[%s273 + $0x1e4] sm:$0xf]
        %v437 = vld [vmem:[%s273 + $0x1e8] sm:$0xf]
        %v438 = vld [vmem:[%s273 + $0x1ec] sm:$0xf]
        %v439 = vld [vmem:[%s273 + $0x1f0] sm:$0xf]
        %v440 = vld [vmem:[%s273 + $0x1f4] sm:$0xf]
        %v441 = vld [vmem:[%s273 + $0x1f8] sm:$0xf]
        %v442 = vld [vmem:[%s273 + $0x1fc] sm:$0xf]
        %v443 = vunpack.c.l.bf16 %v315
        %v444 = vunpack.c.l.bf16 %v316
        %v445 = vunpack.c.l.bf16 %v317
        %v446 = vunpack.c.l.bf16 %v318
        %v447 = vunpack.c.l.bf16 %v319
        %v448 = vunpack.c.l.bf16 %v320
        %v449 = vunpack.c.l.bf16 %v321
        %v450 = vunpack.c.l.bf16 %v322
        %v451 = vunpack.c.l.bf16 %v323
        %v452 = vunpack.c.l.bf16 %v324
        %v453 = vunpack.c.l.bf16 %v325
        %v454 = vunpack.c.l.bf16 %v326
        %v455 = vunpack.c.l.bf16 %v327
        %v456 = vunpack.c.l.bf16 %v328
        %v457 = vunpack.c.l.bf16 %v329
        %v458 = vunpack.c.l.bf16 %v330
        %v459 = vunpack.c.l.bf16 %v331
        %v460 = vunpack.c.l.bf16 %v332
        %v461 = vunpack.c.l.bf16 %v333
        %v462 = vunpack.c.l.bf16 %v334
        %v463 = vunpack.c.l.bf16 %v335
        %v464 = vunpack.c.l.bf16 %v336
        %v465 = vunpack.c.l.bf16 %v337
        %v466 = vunpack.c.l.bf16 %v338
        %v467 = vunpack.c.l.bf16 %v339
        %v468 = vunpack.c.l.bf16 %v340
        %v469 = vunpack.c.l.bf16 %v341
        %v470 = vunpack.c.l.bf16 %v342
        %v471 = vunpack.c.l.bf16 %v343
        %v472 = vunpack.c.l.bf16 %v344
        %v473 = vunpack.c.l.bf16 %v345
        %v474 = vunpack.c.l.bf16 %v346
        %v475 = vunpack.c.l.bf16 %v347
        %v476 = vunpack.c.l.bf16 %v348
        %v477 = vunpack.c.l.bf16 %v349
        %v478 = vunpack.c.l.bf16 %v350
        %v479 = vunpack.c.l.bf16 %v351
        %v480 = vunpack.c.l.bf16 %v352
        %v481 = vunpack.c.l.bf16 %v353
        %v482 = vunpack.c.l.bf16 %v354
        %v483 = vunpack.c.l.bf16 %v355
        %v484 = vunpack.c.l.bf16 %v356
        %v485 = vunpack.c.l.bf16 %v357
        %v486 = vunpack.c.l.bf16 %v358
        %v487 = vunpack.c.l.bf16 %v359
        %v488 = vunpack.c.l.bf16 %v360
        %v489 = vunpack.c.l.bf16 %v361
        %v490 = vunpack.c.l.bf16 %v362
        %v491 = vunpack.c.l.bf16 %v363
        %v492 = vunpack.c.l.bf16 %v364
        %v493 = vunpack.c.l.bf16 %v365
        %v494 = vunpack.c.l.bf16 %v366
        %v495 = vunpack.c.l.bf16 %v367
        %v496 = vunpack.c.l.bf16 %v368
        %v497 = vunpack.c.l.bf16 %v369
        %v498 = vunpack.c.l.bf16 %v370
        %v499 = vunpack.c.l.bf16 %v371
        %v500 = vunpack.c.l.bf16 %v372
        %v501 = vunpack.c.l.bf16 %v373
        %v502 = vunpack.c.l.bf16 %v374
        %v503 = vunpack.c.l.bf16 %v375
        %v504 = vunpack.c.l.bf16 %v376
        %v505 = vunpack.c.l.bf16 %v377
        %v506 = vunpack.c.l.bf16 %v378
        %v507 = vunpack.c.l.bf16 %v379
        %v508 = vunpack.c.l.bf16 %v380
        %v509 = vunpack.c.l.bf16 %v381
        %v510 = vunpack.c.l.bf16 %v382
        %v511 = vunpack.c.l.bf16 %v383
        %v512 = vunpack.c.l.bf16 %v384
        %v513 = vunpack.c.l.bf16 %v385
        %v514 = vunpack.c.l.bf16 %v386
        %v515 = vunpack.c.l.bf16 %v387
        %v516 = vunpack.c.l.bf16 %v388
        %v517 = vunpack.c.l.bf16 %v389
        %v518 = vunpack.c.l.bf16 %v390
        %v519 = vunpack.c.l.bf16 %v391
        %v520 = vunpack.c.l.bf16 %v392
        %v521 = vunpack.c.l.bf16 %v393
        %v522 = vunpack.c.l.bf16 %v394
        %v523 = vunpack.c.l.bf16 %v395
        %v524 = vunpack.c.l.bf16 %v396
        %v525 = vunpack.c.l.bf16 %v397
        %v526 = vunpack.c.l.bf16 %v398
        %v527 = vunpack.c.l.bf16 %v399
        %v528 = vunpack.c.l.bf16 %v400
        %v529 = vunpack.c.l.bf16 %v401
        %v530 = vunpack.c.l.bf16 %v402
        %v531 = vunpack.c.l.bf16 %v403
        %v532 = vunpack.c.l.bf16 %v404
        %v533 = vunpack.c.l.bf16 %v405
        %v534 = vunpack.c.l.bf16 %v406
        %v535 = vunpack.c.l.bf16 %v407
        %v536 = vunpack.c.l.bf16 %v408
        %v537 = vunpack.c.l.bf16 %v409
        %v538 = vunpack.c.l.bf16 %v410
        %v539 = vunpack.c.l.bf16 %v411
        %v540 = vunpack.c.l.bf16 %v412
        %v541 = vunpack.c.l.bf16 %v413
        %v542 = vunpack.c.l.bf16 %v414
        %v543 = vunpack.c.l.bf16 %v415
        %v544 = vunpack.c.l.bf16 %v416
        %v545 = vunpack.c.l.bf16 %v417
        %v546 = vunpack.c.l.bf16 %v418
        %v547 = vunpack.c.l.bf16 %v419
        %v548 = vunpack.c.l.bf16 %v420
        %v549 = vunpack.c.l.bf16 %v421
        %v550 = vunpack.c.l.bf16 %v422
        %v551 = vunpack.c.l.bf16 %v423
        %v552 = vunpack.c.l.bf16 %v424
        %v553 = vunpack.c.l.bf16 %v425
        %v554 = vunpack.c.l.bf16 %v426
        %v555 = vunpack.c.l.bf16 %v427
        %v556 = vunpack.c.l.bf16 %v428
        %v557 = vunpack.c.l.bf16 %v429
        %v558 = vunpack.c.l.bf16 %v430
        %v559 = vunpack.c.l.bf16 %v431
        %v560 = vunpack.c.l.bf16 %v432
        %v561 = vunpack.c.l.bf16 %v433
        %v562 = vunpack.c.l.bf16 %v434
        %v563 = vunpack.c.l.bf16 %v435
        %v564 = vunpack.c.l.bf16 %v436
        %v565 = vunpack.c.l.bf16 %v437
        %v566 = vunpack.c.l.bf16 %v438
        %v567 = vunpack.c.l.bf16 %v439
        %v568 = vunpack.c.l.bf16 %v440
        %v569 = vunpack.c.l.bf16 %v441
        %v570 = vunpack.c.l.bf16 %v442
        %v571 = vadd.f32 %v443, %v475
        %v572 = vadd.f32 %v571, %v507
        %v573 = vadd.f32 %v572, %v539
        %v574 = vadd.f32 %v444, %v476
        %v575 = vadd.f32 %v574, %v508
        %v576 = vadd.f32 %v575, %v540
        %v577 = vadd.f32 %v445, %v477
        %v578 = vadd.f32 %v577, %v509
        %v579 = vadd.f32 %v578, %v541
        %v580 = vadd.f32 %v446, %v478
        %v581 = vadd.f32 %v580, %v510
        %v582 = vadd.f32 %v581, %v542
        %v583 = vadd.f32 %v447, %v479
        %v584 = vadd.f32 %v583, %v511
        %v585 = vadd.f32 %v584, %v543
        %v586 = vadd.f32 %v448, %v480
        %v587 = vadd.f32 %v586, %v512
        %v588 = vadd.f32 %v587, %v544
        %v589 = vadd.f32 %v449, %v481
        %v590 = vadd.f32 %v589, %v513
        %v591 = vadd.f32 %v590, %v545
        %v592 = vadd.f32 %v450, %v482
        %v593 = vadd.f32 %v592, %v514
        %v594 = vadd.f32 %v593, %v546
        %v595 = vadd.f32 %v451, %v483
        %v596 = vadd.f32 %v595, %v515
        %v597 = vadd.f32 %v596, %v547
        %v598 = vadd.f32 %v452, %v484
        %v599 = vadd.f32 %v598, %v516
        %v600 = vadd.f32 %v599, %v548
        %v601 = vadd.f32 %v453, %v485
        %v602 = vadd.f32 %v601, %v517
        %v603 = vadd.f32 %v602, %v549
        %v604 = vadd.f32 %v454, %v486
        %v605 = vadd.f32 %v604, %v518
        %v606 = vadd.f32 %v605, %v550
        %v607 = vadd.f32 %v455, %v487
        %v608 = vadd.f32 %v607, %v519
        %v609 = vadd.f32 %v608, %v551
        %v610 = vadd.f32 %v456, %v488
        %v611 = vadd.f32 %v610, %v520
        %v612 = vadd.f32 %v611, %v552
        %v613 = vadd.f32 %v457, %v489
        %v614 = vadd.f32 %v613, %v521
        %v615 = vadd.f32 %v614, %v553
        %v616 = vadd.f32 %v458, %v490
        %v617 = vadd.f32 %v616, %v522
        %v618 = vadd.f32 %v617, %v554
        %v619 = vadd.f32 %v459, %v491
        %v620 = vadd.f32 %v619, %v523
        %v621 = vadd.f32 %v620, %v555
        %v622 = vadd.f32 %v460, %v492
        %v623 = vadd.f32 %v622, %v524
        %v624 = vadd.f32 %v623, %v556
        %v625 = vadd.f32 %v461, %v493
        %v626 = vadd.f32 %v625, %v525
        %v627 = vadd.f32 %v626, %v557
        %v628 = vadd.f32 %v462, %v494
        %v629 = vadd.f32 %v628, %v526
        %v630 = vadd.f32 %v629, %v558
        %v631 = vadd.f32 %v463, %v495
        %v632 = vadd.f32 %v631, %v527
        %v633 = vadd.f32 %v632, %v559
        %v634 = vadd.f32 %v464, %v496
        %v635 = vadd.f32 %v634, %v528
        %v636 = vadd.f32 %v635, %v560
        %v637 = vadd.f32 %v465, %v497
        %v638 = vadd.f32 %v637, %v529
        %v639 = vadd.f32 %v638, %v561
        %v640 = vadd.f32 %v466, %v498
        %v641 = vadd.f32 %v640, %v530
        %v642 = vadd.f32 %v641, %v562
        %v643 = vadd.f32 %v467, %v499
        %v644 = vadd.f32 %v643, %v531
        %v645 = vadd.f32 %v644, %v563
        %v646 = vadd.f32 %v468, %v500
        %v647 = vadd.f32 %v646, %v532
        %v648 = vadd.f32 %v647, %v564
        %v649 = vadd.f32 %v469, %v501
        %v650 = vadd.f32 %v649, %v533
        %v651 = vadd.f32 %v650, %v565
        %v652 = vadd.f32 %v470, %v502
        %v653 = vadd.f32 %v652, %v534
        %v654 = vadd.f32 %v653, %v566
        %v655 = vadd.f32 %v471, %v503
        %v656 = vadd.f32 %v655, %v535
        %v657 = vadd.f32 %v656, %v567
        %v658 = vadd.f32 %v472, %v504
        %v659 = vadd.f32 %v658, %v536
        %v660 = vadd.f32 %v659, %v568
        %v661 = vadd.f32 %v473, %v505
        %v662 = vadd.f32 %v661, %v537
        %v663 = vadd.f32 %v662, %v569
        %v664 = vadd.f32 %v474, %v506
        %v665 = vadd.f32 %v664, %v538
        %v666 = vadd.f32 %v665, %v570
        %v667 = vrcp.pop 4.0
        %v668 = vmul.f32 %v573, %v667
        %v669 = vmul.f32 %v576, %v667
        %v670 = vmul.f32 %v579, %v667
        %v671 = vmul.f32 %v582, %v667
        %v672 = vmul.f32 %v585, %v667
        %v673 = vmul.f32 %v588, %v667
        %v674 = vmul.f32 %v591, %v667
        %v675 = vmul.f32 %v594, %v667
        %v676 = vmul.f32 %v597, %v667
        %v677 = vmul.f32 %v600, %v667
        %v678 = vmul.f32 %v603, %v667
        %v679 = vmul.f32 %v606, %v667
        %v680 = vmul.f32 %v609, %v667
        %v681 = vmul.f32 %v612, %v667
        %v682 = vmul.f32 %v615, %v667
        %v683 = vmul.f32 %v618, %v667
        %v684 = vmul.f32 %v621, %v667
        %v685 = vmul.f32 %v624, %v667
        %v686 = vmul.f32 %v627, %v667
        %v687 = vmul.f32 %v630, %v667
        %v688 = vmul.f32 %v633, %v667
        %v689 = vmul.f32 %v636, %v667
        %v690 = vmul.f32 %v639, %v667
        %v691 = vmul.f32 %v642, %v667
        %v692 = vmul.f32 %v645, %v667
        %v693 = vmul.f32 %v648, %v667
        %v694 = vmul.f32 %v651, %v667
        %v695 = vmul.f32 %v654, %v667
        %v696 = vmul.f32 %v657, %v667
        %v697 = vmul.f32 %v660, %v667
        %v698 = vmul.f32 %v663, %v667
        %v699 = vmul.f32 %v666, %v667
        %v700 = vmax.f32 %v443, %v475
        %v701 = vmax.f32 %v700, %v507
        %v702 = vmax.f32 %v701, %v539
        %v703 = vmax.f32 %v444, %v476
        %v704 = vmax.f32 %v703, %v508
        %v705 = vmax.f32 %v704, %v540
        %v706 = vmax.f32 %v445, %v477
        %v707 = vmax.f32 %v706, %v509
        %v708 = vmax.f32 %v707, %v541
        %v709 = vmax.f32 %v446, %v478
        %v710 = vmax.f32 %v709, %v510
        %v711 = vmax.f32 %v710, %v542
        %v712 = vmax.f32 %v447, %v479
        %v713 = vmax.f32 %v712, %v511
        %v714 = vmax.f32 %v713, %v543
        %v715 = vmax.f32 %v448, %v480
        %v716 = vmax.f32 %v715, %v512
        %v717 = vmax.f32 %v716, %v544
        %v718 = vmax.f32 %v449, %v481
        %v719 = vmax.f32 %v718, %v513
        %v720 = vmax.f32 %v719, %v545
        %v721 = vmax.f32 %v450, %v482
        %v722 = vmax.f32 %v721, %v514
        %v723 = vmax.f32 %v722, %v546
        %v724 = vmax.f32 %v451, %v483
        %v725 = vmax.f32 %v724, %v515
        %v726 = vmax.f32 %v725, %v547
        %v727 = vmax.f32 %v452, %v484
        %v728 = vmax.f32 %v727, %v516
        %v729 = vmax.f32 %v728, %v548
        %v730 = vmax.f32 %v453, %v485
        %v731 = vmax.f32 %v730, %v517
        %v732 = vmax.f32 %v731, %v549
        %v733 = vmax.f32 %v454, %v486
        %v734 = vmax.f32 %v733, %v518
        %v735 = vmax.f32 %v734, %v550
        %v736 = vmax.f32 %v455, %v487
        %v737 = vmax.f32 %v736, %v519
        %v738 = vmax.f32 %v737, %v551
        %v739 = vmax.f32 %v456, %v488
        %v740 = vmax.f32 %v739, %v520
        %v741 = vmax.f32 %v740, %v552
        %v742 = vmax.f32 %v457, %v489
        %v743 = vmax.f32 %v742, %v521
        %v744 = vmax.f32 %v743, %v553
        %v745 = vmax.f32 %v458, %v490
        %v746 = vmax.f32 %v745, %v522
        %v747 = vmax.f32 %v746, %v554
        %v748 = vmax.f32 %v459, %v491
        %v749 = vmax.f32 %v748, %v523
        %v750 = vmax.f32 %v749, %v555
        %v751 = vmax.f32 %v460, %v492
        %v752 = vmax.f32 %v751, %v524
        %v753 = vmax.f32 %v752, %v556
        %v754 = vmax.f32 %v461, %v493
        %v755 = vmax.f32 %v754, %v525
        %v756 = vmax.f32 %v755, %v557
        %v757 = vmax.f32 %v462, %v494
        %v758 = vmax.f32 %v757, %v526
        %v759 = vmax.f32 %v758, %v558
        %v760 = vmax.f32 %v463, %v495
        %v761 = vmax.f32 %v760, %v527
        %v762 = vmax.f32 %v761, %v559
        %v763 = vmax.f32 %v464, %v496
        %v764 = vmax.f32 %v763, %v528
        %v765 = vmax.f32 %v764, %v560
        %v766 = vmax.f32 %v465, %v497
        %v767 = vmax.f32 %v766, %v529
        %v768 = vmax.f32 %v767, %v561
        %v769 = vmax.f32 %v466, %v498
        %v770 = vmax.f32 %v769, %v530
        %v771 = vmax.f32 %v770, %v562
        %v772 = vmax.f32 %v467, %v499
        %v773 = vmax.f32 %v772, %v531
        %v774 = vmax.f32 %v773, %v563
        %v775 = vmax.f32 %v468, %v500
        %v776 = vmax.f32 %v775, %v532
        %v777 = vmax.f32 %v776, %v564
        %v778 = vmax.f32 %v469, %v501
        %v779 = vmax.f32 %v778, %v533
        %v780 = vmax.f32 %v779, %v565
        %v781 = vmax.f32 %v470, %v502
        %v782 = vmax.f32 %v781, %v534
        %v783 = vmax.f32 %v782, %v566
        %v784 = vmax.f32 %v471, %v503
        %v785 = vmax.f32 %v784, %v535
        %v786 = vmax.f32 %v785, %v567
        %v787 = vmax.f32 %v472, %v504
        %v788 = vmax.f32 %v787, %v536
        %v789 = vmax.f32 %v788, %v568
        %v790 = vmax.f32 %v473, %v505
        %v791 = vmax.f32 %v790, %v537
        %v792 = vmax.f32 %v791, %v569
        %v793 = vmax.f32 %v474, %v506
        %v794 = vmax.f32 %v793, %v538
        %v795 = vmax.f32 %v794, %v570
        %v796 = vld [vmem:[%s3] sm:$0xf]
        %v797 = vpack.c.bf16 %v669, %v668
        %v798 = vpack.c.bf16 %v671, %v670
        %v799 = vpack.c.bf16 %v673, %v672
        %v800 = vpack.c.bf16 %v675, %v674
        %v801 = vpack.c.bf16 %v677, %v676
        %v802 = vpack.c.bf16 %v679, %v678
        %v803 = vpack.c.bf16 %v681, %v680
        %v804 = vpack.c.bf16 %v683, %v682
        %v805 = vpack.c.bf16 %v685, %v684
        %v806 = vpack.c.bf16 %v687, %v686
        %v807 = vpack.c.bf16 %v689, %v688
        %v808 = vpack.c.bf16 %v691, %v690
        %v809 = vpack.c.bf16 %v693, %v692
        %v810 = vpack.c.bf16 %v695, %v694
        %v811 = vpack.c.bf16 %v697, %v696
        %v812 = vpack.c.bf16 %v699, %v698
        %v813 = vld [vmem:[#allocation5] sm:$0xf]
        %v814 = vld [vmem:[#allocation5 + $0x4] sm:$0xf]
        %v815 = vld [vmem:[#allocation5 + $0x8] sm:$0xf]
        %v816 = vld [vmem:[#allocation5 + $0xc] sm:$0xf]
        %v817 = vld [vmem:[#allocation5 + $0x10] sm:$0xf]
        %v818 = vld [vmem:[#allocation5 + $0x14] sm:$0xf]
        %v819 = vld [vmem:[#allocation5 + $0x18] sm:$0xf]
        %v820 = vld [vmem:[#allocation5 + $0x1c] sm:$0xf]
        %v821 = vld [vmem:[#allocation5 + $0x20] sm:$0xf]
        %v822 = vld [vmem:[#allocation5 + $0x24] sm:$0xf]
        %v823 = vld [vmem:[#allocation5 + $0x28] sm:$0xf]
        %v824 = vld [vmem:[#allocation5 + $0x2c] sm:$0xf]
        %v825 = vld [vmem:[#allocation5 + $0x30] sm:$0xf]
        %v826 = vld [vmem:[#allocation5 + $0x34] sm:$0xf]
        %v827 = vld [vmem:[#allocation5 + $0x38] sm:$0xf]
        %v828 = vld [vmem:[#allocation5 + $0x3c] sm:$0xf]
        %v829 = vpack.c.bf16 %v705, %v702
        %v830 = vpack.c.bf16 %v711, %v708
        %v831 = vpack.c.bf16 %v717, %v714
        %v832 = vpack.c.bf16 %v723, %v720
        %v833 = vpack.c.bf16 %v729, %v726
        %v834 = vpack.c.bf16 %v735, %v732
        %v835 = vpack.c.bf16 %v741, %v738
        %v836 = vpack.c.bf16 %v747, %v744
        %v837 = vpack.c.bf16 %v753, %v750
        %v838 = vpack.c.bf16 %v759, %v756
        %v839 = vpack.c.bf16 %v765, %v762
        %v840 = vpack.c.bf16 %v771, %v768
        %v841 = vpack.c.bf16 %v777, %v774
        %v842 = vpack.c.bf16 %v783, %v780
        %v843 = vpack.c.bf16 %v789, %v786
        %v844 = vpack.c.bf16 %v795, %v792
        %v845 = vld [vmem:[#allocation7] sm:$0xf]
        %v846 = vld [vmem:[#allocation7 + $0x4] sm:$0xf]
        %v847 = vld [vmem:[#allocation7 + $0x8] sm:$0xf]
        %v848 = vld [vmem:[#allocation7 + $0xc] sm:$0xf]
        %v849 = vld [vmem:[#allocation7 + $0x10] sm:$0xf]
        %v850 = vld [vmem:[#allocation7 + $0x14] sm:$0xf]
        %v851 = vld [vmem:[#allocation7 + $0x18] sm:$0xf]
        %v852 = vld [vmem:[#allocation7 + $0x1c] sm:$0xf]
        %v853 = vld [vmem:[#allocation7 + $0x20] sm:$0xf]
        %v854 = vld [vmem:[#allocation7 + $0x24] sm:$0xf]
        %v855 = vld [vmem:[#allocation7 + $0x28] sm:$0xf]
        %v856 = vld [vmem:[#allocation7 + $0x2c] sm:$0xf]
        %v857 = vld [vmem:[#allocation7 + $0x30] sm:$0xf]
        %v858 = vld [vmem:[#allocation7 + $0x34] sm:$0xf]
        %v859 = vld [vmem:[#allocation7 + $0x38] sm:$0xf]
        %v860 = vld [vmem:[#allocation7 + $0x3c] sm:$0xf]
        %v877 = vunpack.c.l.b16 %v845
        %v878 = vunpack.c.l.b16 %v846
        %v879 = vunpack.c.l.b16 %v847
        %v880 = vunpack.c.l.b16 %v848
        %v881 = vunpack.c.l.b16 %v849
        %v882 = vunpack.c.l.b16 %v850
        %v883 = vunpack.c.l.b16 %v851
        %v884 = vunpack.c.l.b16 %v852
        %v885 = vunpack.c.l.b16 %v853
        %v886 = vunpack.c.l.b16 %v854
        %v887 = vunpack.c.l.b16 %v855
        %v888 = vunpack.c.l.b16 %v856
        %v889 = vunpack.c.l.b16 %v857
        %v890 = vunpack.c.l.b16 %v858
        %v891 = vunpack.c.l.b16 %v859
        %v892 = vunpack.c.l.b16 %v860
        %v893 = vpack.c.b16 %v878, %v877
        %v894 = vpack.c.b16 %v880, %v879
        %v895 = vpack.c.b16 %v882, %v881
        %v896 = vpack.c.b16 %v884, %v883
        %v897 = vpack.c.b16 %v886, %v885
        %v898 = vpack.c.b16 %v888, %v887
        %v899 = vpack.c.b16 %v890, %v889
        %v900 = vpack.c.b16 %v892, %v891
        %909 = vmatprep.subr.bf16.mxu0 0
        %910 = vmatpush1.bf16.msra.mxu0 %v893
        %911 = vmatprep.subr.bf16.mxu0 0
        %912 = vmatpush1.bf16.msra.mxu0 %v894
        %913 = vmatprep.subr.bf16.mxu0 0
        %914 = vmatpush1.bf16.msra.mxu0 %v895
        %915 = vmatprep.subr.bf16.mxu0 0
        %916 = vmatpush1.bf16.msra.mxu0 %v896
        %917 = vmatprep.subr.bf16.mxu0 0
        %918 = vmatpush1.bf16.msra.mxu0 %v897
        %919 = vmatprep.subr.bf16.mxu0 0
        %920 = vmatpush1.bf16.msra.mxu0 %v898
        %921 = vmatprep.subr.bf16.mxu0 0
        %922 = vmatpush1.bf16.msra.mxu0 %v899
        %923 = vmatprep.subr.bf16.mxu0 0
        %924 = vmatpush1.bf16.msra.mxu0 %v900
        %925 = vmatprep.subr.bf16.mxu0 0
        %926 = vmatpush1.bf16.msra.mxu0 0
        %927 = vmatprep.subr.bf16.mxu0 0
        %928 = vmatpush1.bf16.msra.mxu0 0
        %929 = vmatprep.subr.bf16.mxu0 0
        %930 = vmatpush1.bf16.msra.mxu0 0
        %931 = vmatprep.subr.bf16.mxu0 0
        %932 = vmatpush1.bf16.msra.mxu0 0
        %933 = vmatprep.subr.bf16.mxu0 0
        %934 = vmatpush1.bf16.msra.mxu0 0
        %935 = vmatprep.subr.bf16.mxu0 0
        %936 = vmatpush1.bf16.msra.mxu0 0
        %937 = vmatprep.subr.bf16.mxu0 0
        %938 = vmatpush1.bf16.msra.mxu0 0
        %939 = vmatprep.subr.bf16.mxu0 0
        %940 = vmatpush1.bf16.msra.mxu0 0
        %941 = vmatprep.mubr.bf16.mxu0 0
        %942 = vmatmul.mubr.bf16.gmra.mrb[0].mxu0 %v829
        %v943 = vpop.f32.mrb[0].mxu0
        %v944 = vadd.f32 0.0, %v943
        %v945 = vpop.f32.mrb[0].mxu0
        %v946 = vpop.f32.mrb[0].mxu0
        %v947 = vadd.f32 0.0, %v946
        %v948 = vpop.f32.mrb[0].mxu0
        %949 = vmatprep.mubr.bf16.mxu0 0
        %950 = vmatmul.mubr.bf16.gmra.mrb[0].mxu0 %v830
        %v951 = vpop.f32.mrb[0].mxu0
        %v952 = vadd.f32 0.0, %v951
        %v953 = vpop.f32.mrb[0].mxu0
        %v954 = vpop.f32.mrb[0].mxu0
        %v955 = vadd.f32 0.0, %v954
        %v956 = vpop.f32.mrb[0].mxu0
        %957 = vmatprep.mubr.bf16.mxu0 0
        %958 = vmatmul.mubr.bf16.gmra.mrb[0].mxu0 %v831
        %v959 = vpop.f32.mrb[0].mxu0
        %v960 = vadd.f32 0.0, %v959
        %v961 = vpop.f32.mrb[0].mxu0
        %v962 = vpop.f32.mrb[0].mxu0
        %v963 = vadd.f32 0.0, %v962
        %v964 = vpop.f32.mrb[0].mxu0
        %965 = vmatprep.mubr.bf16.mxu0 0
        %966 = vmatmul.mubr.bf16.gmra.mrb[0].mxu0 %v832
        %v967 = vpop.f32.mrb[0].mxu0
        %v968 = vadd.f32 0.0, %v967
        %v969 = vpop.f32.mrb[0].mxu0
        %v970 = vpop.f32.mrb[0].mxu0
        %v971 = vadd.f32 0.0, %v970
        %v972 = vpop.f32.mrb[0].mxu0
        %973 = vmatprep.mubr.bf16.mxu0 0
        %974 = vmatmul.mubr.bf16.gmra.mrb[0].mxu0 %v833
        %v975 = vpop.f32.mrb[0].mxu0
        %v976 = vadd.f32 0.0, %v975
        %v977 = vpop.f32.mrb[0].mxu0
        %v978 = vpop.f32.mrb[0].mxu0
        %v979 = vadd.f32 0.0, %v978
        %v980 = vpop.f32.mrb[0].mxu0
        %981 = vmatprep.mubr.bf16.mxu0 0
        %982 = vmatmul.mubr.bf16.gmra.mrb[0].mxu0 %v834
        %v983 = vpop.f32.mrb[0].mxu0
        %v984 = vadd.f32 0.0, %v983
        %v985 = vpop.f32.mrb[0].mxu0
        %v986 = vpop.f32.mrb[0].mxu0
        %v987 = vadd.f32 0.0, %v986
        %v988 = vpop.f32.mrb[0].mxu0
        %989 = vmatprep.mubr.bf16.mxu0 0
        %990 = vmatmul.mubr.bf16.gmra.mrb[0].mxu0 %v835
        %v991 = vpop.f32.mrb[0].mxu0
        %v992 = vadd.f32 0.0, %v991
        %v993 = vpop.f32.mrb[0].mxu0
        %v994 = vpop.f32.mrb[0].mxu0
        %v995 = vadd.f32 0.0, %v994
        %v996 = vpop.f32.mrb[0].mxu0
        %997 = vmatprep.mubr.bf16.mxu0 0
        %998 = vmatmul.mubr.bf16.gmra.mrb[0].mxu0 %v836
        %v999 = vpop.f32.mrb[0].mxu0
        %v1000 = vadd.f32 0.0, %v999
        %v1001 = vpop.f32.mrb[0].mxu0
        %v1002 = vpop.f32.mrb[0].mxu0
        %v1003 = vadd.f32 0.0, %v1002
        %v1004 = vpop.f32.mrb[0].mxu0
        %1005 = vmatprep.mubr.bf16.mxu0 0
        %1006 = vmatmul.mubr.bf16.gmra.mrb[0].mxu0 %v837
        %v1007 = vpop.f32.mrb[0].mxu0
        %v1008 = vadd.f32 0.0, %v1007
        %v1009 = vpop.f32.mrb[0].mxu0
        %v1010 = vpop.f32.mrb[0].mxu0
        %v1011 = vadd.f32 0.0, %v1010
        %v1012 = vpop.f32.mrb[0].mxu0
        %1013 = vmatprep.mubr.bf16.mxu0 0
        %1014 = vmatmul.mubr.bf16.gmra.mrb[0].mxu0 %v838
        %v1015 = vpop.f32.mrb[0].mxu0
        %v1016 = vadd.f32 0.0, %v1015
        %v1017 = vpop.f32.mrb[0].mxu0
        %v1018 = vpop.f32.mrb[0].mxu0
        %v1019 = vadd.f32 0.0, %v1018
        %v1020 = vpop.f32.mrb[0].mxu0
        %1021 = vmatprep.mubr.bf16.mxu0 0
        %1022 = vmatmul.mubr.bf16.gmra.mrb[0].mxu0 %v839
        %v1023 = vpop.f32.mrb[0].mxu0
        %v1024 = vadd.f32 0.0, %v1023
        %v1025 = vpop.f32.mrb[0].mxu0
        %v1026 = vpop.f32.mrb[0].mxu0
        %v1027 = vadd.f32 0.0, %v1026
        %v1028 = vpop.f32.mrb[0].mxu0
        %1029 = vmatprep.mubr.bf16.mxu0 0
        %1030 = vmatmul.mubr.bf16.gmra.mrb[0].mxu0 %v840
        %v1031 = vpop.f32.mrb[0].mxu0
        %v1032 = vadd.f32 0.0, %v1031
        %v1033 = vpop.f32.mrb[0].mxu0
        %v1034 = vpop.f32.mrb[0].mxu0
        %v1035 = vadd.f32 0.0, %v1034
        %v1036 = vpop.f32.mrb[0].mxu0
        %1037 = vmatprep.mubr.bf16.mxu0 0
        %1038 = vmatmul.mubr.bf16.gmra.mrb[0].mxu0 %v841
        %v1039 = vpop.f32.mrb[0].mxu0
        %v1040 = vadd.f32 0.0, %v1039
        %v1041 = vpop.f32.mrb[0].mxu0
        %v1042 = vpop.f32.mrb[0].mxu0
        %v1043 = vadd.f32 0.0, %v1042
        %v1044 = vpop.f32.mrb[0].mxu0
        %1045 = vmatprep.mubr.bf16.mxu0 0
        %1046 = vmatmul.mubr.bf16.gmra.mrb[0].mxu0 %v842
        %v1047 = vpop.f32.mrb[0].mxu0
        %v1048 = vadd.f32 0.0, %v1047
        %v1049 = vpop.f32.mrb[0].mxu0
        %v1050 = vpop.f32.mrb[0].mxu0
        %v1051 = vadd.f32 0.0, %v1050
        %v1052 = vpop.f32.mrb[0].mxu0
        %1053 = vmatprep.mubr.bf16.mxu0 0
        %1054 = vmatmul.mubr.bf16.gmra.mrb[0].mxu0 %v843
        %v1055 = vpop.f32.mrb[0].mxu0
        %v1056 = vadd.f32 0.0, %v1055
        %v1057 = vpop.f32.mrb[0].mxu0
        %v1058 = vpop.f32.mrb[0].mxu0
        %v1059 = vadd.f32 0.0, %v1058
        %v1060 = vpop.f32.mrb[0].mxu0
        %1061 = vmatprep.mubr.bf16.mxu0 0
        %1062 = vmatmul.mubr.bf16.gmra.mrb[0].mxu0 %v844
        %v1063 = vpop.f32.mrb[0].mxu0
        %v1064 = vadd.f32 0.0, %v1063
        %v1065 = vpop.f32.mrb[0].mxu0
        %v1066 = vpop.f32.mrb[0].mxu0
        %v1067 = vadd.f32 0.0, %v1066
        %v1068 = vpop.f32.mrb[0].mxu0
        %1069 = vdwg.mxu0
        %v1086 = vunpack.c.l.b16 %v813
        %v1087 = vunpack.c.l.b16 %v814
        %v1088 = vunpack.c.l.b16 %v815
        %v1089 = vunpack.c.l.b16 %v816
        %v1090 = vunpack.c.l.b16 %v817
        %v1091 = vunpack.c.l.b16 %v818
        %v1092 = vunpack.c.l.b16 %v819
        %v1093 = vunpack.c.l.b16 %v820
        %v1094 = vunpack.c.l.b16 %v821
        %v1095 = vunpack.c.l.b16 %v822
        %v1096 = vunpack.c.l.b16 %v823
        %v1097 = vunpack.c.l.b16 %v824
        %v1098 = vunpack.c.l.b16 %v825
        %v1099 = vunpack.c.l.b16 %v826
        %v1100 = vunpack.c.l.b16 %v827
        %v1101 = vunpack.c.l.b16 %v828
        %v1102 = vpack.c.b16 %v1087, %v1086
        %v1103 = vpack.c.b16 %v1089, %v1088
        %v1104 = vpack.c.b16 %v1091, %v1090
        %v1105 = vpack.c.b16 %v1093, %v1092
        %v1106 = vpack.c.b16 %v1095, %v1094
        %v1107 = vpack.c.b16 %v1097, %v1096
        %v1108 = vpack.c.b16 %v1099, %v1098
        %v1109 = vpack.c.b16 %v1101, %v1100
        %1118 = vmatprep.subr.bf16.mxu0 0
        %1119 = vmatpush1.bf16.msra.mxu0 %v1102
        %1120 = vmatprep.subr.bf16.mxu0 0
        %1121 = vmatpush1.bf16.msra.mxu0 %v1103
        %1122 = vmatprep.subr.bf16.mxu0 0
        %1123 = vmatpush1.bf16.msra.mxu0 %v1104
        %1124 = vmatprep.subr.bf16.mxu0 0
        %1125 = vmatpush1.bf16.msra.mxu0 %v1105
        %1126 = vmatprep.subr.bf16.mxu0 0
        %1127 = vmatpush1.bf16.msra.mxu0 %v1106
        %1128 = vmatprep.subr.bf16.mxu0 0
        %1129 = vmatpush1.bf16.msra.mxu0 %v1107
        %1130 = vmatprep.subr.bf16.mxu0 0
        %1131 = vmatpush1.bf16.msra.mxu0 %v1108
        %1132 = vmatprep.subr.bf16.mxu0 0
        %1133 = vmatpush1.bf16.msra.mxu0 %v1109
        %1134 = vmatprep.subr.bf16.mxu0 0
        %1135 = vmatpush1.bf16.msra.mxu0 0
        %1136 = vmatprep.subr.bf16.mxu0 0
        %1137 = vmatpush1.bf16.msra.mxu0 0
        %1138 = vmatprep.subr.bf16.mxu0 0
        %1139 = vmatpush1.bf16.msra.mxu0 0
        %1140 = vmatprep.subr.bf16.mxu0 0
        %1141 = vmatpush1.bf16.msra.mxu0 0
        %1142 = vmatprep.subr.bf16.mxu0 0
        %1143 = vmatpush1.bf16.msra.mxu0 0
        %1144 = vmatprep.subr.bf16.mxu0 0
        %1145 = vmatpush1.bf16.msra.mxu0 0
        %1146 = vmatprep.subr.bf16.mxu0 0
        %1147 = vmatpush1.bf16.msra.mxu0 0
        %1148 = vmatprep.subr.bf16.mxu0 0
        %1149 = vmatpush1.bf16.msra.mxu0 0
        %1150 = vmatprep.mubr.bf16.mxu0 0
        %1151 = vmatmul.mubr.bf16.gmra.mrb[0].mxu0 %v797
        %v1152 = vpop.f32.mrb[0].mxu0
        %v1153 = vadd.f32 %v944, %v1152
        %v1154 = vpop.f32.mrb[0].mxu0
        %v1155 = vpop.f32.mrb[0].mxu0
        %v1156 = vadd.f32 %v947, %v1155
        %v1157 = vpop.f32.mrb[0].mxu0
        %1158 = vmatprep.mubr.bf16.mxu0 0
        %1159 = vmatmul.mubr.bf16.gmra.mrb[0].mxu0 %v798
        %v1160 = vpop.f32.mrb[0].mxu0
        %v1161 = vadd.f32 %v952, %v1160
        %v1162 = vpop.f32.mrb[0].mxu0
        %v1163 = vpop.f32.mrb[0].mxu0
        %v1164 = vadd.f32 %v955, %v1163
        %v1165 = vpop.f32.mrb[0].mxu0
        %1166 = vmatprep.mubr.bf16.mxu0 0
        %1167 = vmatmul.mubr.bf16.gmra.mrb[0].mxu0 %v799
        %v1168 = vpop.f32.mrb[0].mxu0
        %v1169 = vadd.f32 %v960, %v1168
        %v1170 = vpop.f32.mrb[0].mxu0
        %v1171 = vpop.f32.mrb[0].mxu0
        %v1172 = vadd.f32 %v963, %v1171
        %v1173 = vpop.f32.mrb[0].mxu0
        %1174 = vmatprep.mubr.bf16.mxu0 0
        %1175 = vmatmul.mubr.bf16.gmra.mrb[0].mxu0 %v800
        %v1176 = vpop.f32.mrb[0].mxu0
        %v1177 = vadd.f32 %v968, %v1176
        %v1178 = vpop.f32.mrb[0].mxu0
        %v1179 = vpop.f32.mrb[0].mxu0
        %v1180 = vadd.f32 %v971, %v1179
        %v1181 = vpop.f32.mrb[0].mxu0
        %1182 = vmatprep.mubr.bf16.mxu0 0
        %1183 = vmatmul.mubr.bf16.gmra.mrb[0].mxu0 %v801
        %v1184 = vpop.f32.mrb[0].mxu0
        %v1185 = vadd.f32 %v976, %v1184
        %v1186 = vpop.f32.mrb[0].mxu0
        %v1187 = vpop.f32.mrb[0].mxu0
        %v1188 = vadd.f32 %v979, %v1187
        %v1189 = vpop.f32.mrb[0].mxu0
        %1190 = vmatprep.mubr.bf16.mxu0 0
        %1191 = vmatmul.mubr.bf16.gmra.mrb[0].mxu0 %v802
        %v1192 = vpop.f32.mrb[0].mxu0
        %v1193 = vadd.f32 %v984, %v1192
        %v1194 = vpop.f32.mrb[0].mxu0
        %v1195 = vpop.f32.mrb[0].mxu0
        %v1196 = vadd.f32 %v987, %v1195
        %v1197 = vpop.f32.mrb[0].mxu0
        %1198 = vmatprep.mubr.bf16.mxu0 0
        %1199 = vmatmul.mubr.bf16.gmra.mrb[0].mxu0 %v803
        %v1200 = vpop.f32.mrb[0].mxu0
        %v1201 = vadd.f32 %v992, %v1200
        %v1202 = vpop.f32.mrb[0].mxu0
        %v1203 = vpop.f32.mrb[0].mxu0
        %v1204 = vadd.f32 %v995, %v1203
        %v1205 = vpop.f32.mrb[0].mxu0
        %1206 = vmatprep.mubr.bf16.mxu0 0
        %1207 = vmatmul.mubr.bf16.gmra.mrb[0].mxu0 %v804
        %v1208 = vpop.f32.mrb[0].mxu0
        %v1209 = vadd.f32 %v1000, %v1208
        %v1210 = vpop.f32.mrb[0].mxu0
        %v1211 = vpop.f32.mrb[0].mxu0
        %v1212 = vadd.f32 %v1003, %v1211
        %v1213 = vpop.f32.mrb[0].mxu0
        %1214 = vmatprep.mubr.bf16.mxu0 0
        %1215 = vmatmul.mubr.bf16.gmra.mrb[0].mxu0 %v805
        %v1216 = vpop.f32.mrb[0].mxu0
        %v1217 = vadd.f32 %v1008, %v1216
        %v1218 = vpop.f32.mrb[0].mxu0
        %v1219 = vpop.f32.mrb[0].mxu0
        %v1220 = vadd.f32 %v1011, %v1219
        %v1221 = vpop.f32.mrb[0].mxu0
        %1222 = vmatprep.mubr.bf16.mxu0 0
        %1223 = vmatmul.mubr.bf16.gmra.mrb[0].mxu0 %v806
        %v1224 = vpop.f32.mrb[0].mxu0
        %v1225 = vadd.f32 %v1016, %v1224
        %v1226 = vpop.f32.mrb[0].mxu0
        %v1227 = vpop.f32.mrb[0].mxu0
        %v1228 = vadd.f32 %v1019, %v1227
        %v1229 = vpop.f32.mrb[0].mxu0
        %1230 = vmatprep.mubr.bf16.mxu0 0
        %1231 = vmatmul.mubr.bf16.gmra.mrb[0].mxu0 %v807
        %v1232 = vpop.f32.mrb[0].mxu0
        %v1233 = vadd.f32 %v1024, %v1232
        %v1234 = vpop.f32.mrb[0].mxu0
        %v1235 = vpop.f32.mrb[0].mxu0
        %v1236 = vadd.f32 %v1027, %v1235
        %v1237 = vpop.f32.mrb[0].mxu0
        %1238 = vmatprep.mubr.bf16.mxu0 0
        %1239 = vmatmul.mubr.bf16.gmra.mrb[0].mxu0 %v808
        %v1240 = vpop.f32.mrb[0].mxu0
        %v1241 = vadd.f32 %v1032, %v1240
        %v1242 = vpop.f32.mrb[0].mxu0
        %v1243 = vpop.f32.mrb[0].mxu0
        %v1244 = vadd.f32 %v1035, %v1243
        %v1245 = vpop.f32.mrb[0].mxu0
        %1246 = vmatprep.mubr.bf16.mxu0 0
        %1247 = vmatmul.mubr.bf16.gmra.mrb[0].mxu0 %v809
        %v1248 = vpop.f32.mrb[0].mxu0
        %v1249 = vadd.f32 %v1040, %v1248
        %v1250 = vpop.f32.mrb[0].mxu0
        %v1251 = vpop.f32.mrb[0].mxu0
        %v1252 = vadd.f32 %v1043, %v1251
        %v1253 = vpop.f32.mrb[0].mxu0
        %1254 = vmatprep.mubr.bf16.mxu0 0
        %1255 = vmatmul.mubr.bf16.gmra.mrb[0].mxu0 %v810
        %v1256 = vpop.f32.mrb[0].mxu0
        %v1257 = vadd.f32 %v1048, %v1256
        %v1258 = vpop.f32.mrb[0].mxu0
        %v1259 = vpop.f32.mrb[0].mxu0
        %v1260 = vadd.f32 %v1051, %v1259
        %v1261 = vpop.f32.mrb[0].mxu0
        %1262 = vmatprep.mubr.bf16.mxu0 0
        %1263 = vmatmul.mubr.bf16.gmra.mrb[0].mxu0 %v811
        %v1264 = vpop.f32.mrb[0].mxu0
        %v1265 = vadd.f32 %v1056, %v1264
        %v1266 = vpop.f32.mrb[0].mxu0
        %v1267 = vpop.f32.mrb[0].mxu0
        %v1268 = vadd.f32 %v1059, %v1267
        %v1269 = vpop.f32.mrb[0].mxu0
        %1270 = vmatprep.mubr.bf16.mxu0 0
        %1271 = vmatmul.mubr.bf16.gmra.mrb[0].mxu0 %v812
        %v1272 = vpop.f32.mrb[0].mxu0
        %v1273 = vadd.f32 %v1064, %v1272
        %v1274 = vpop.f32.mrb[0].mxu0
        %v1275 = vpop.f32.mrb[0].mxu0
        %v1276 = vadd.f32 %v1067, %v1275
        %v1277 = vpop.f32.mrb[0].mxu0
        %1278 = vdwg.mxu0
        %v1279 = vlaneseq
        %v1280 = vshrl.u32 %v1279, 7
        %v1281 = vsub.s32 0, %v1280
        %v1282 = vrot.slane %v796, %v1281
        %v1283 = vadd.f32 %v1153, %v1282
        %v1284 = vadd.f32 %v1156, %v1282
        %v1285 = vadd.f32 %v1161, %v1282
        %v1286 = vadd.f32 %v1164, %v1282
        %v1287 = vadd.f32 %v1169, %v1282
        %v1288 = vadd.f32 %v1172, %v1282
        %v1289 = vadd.f32 %v1177, %v1282
        %v1290 = vadd.f32 %v1180, %v1282
        %v1291 = vadd.f32 %v1185, %v1282
        %v1292 = vadd.f32 %v1188, %v1282
        %v1293 = vadd.f32 %v1193, %v1282
        %v1294 = vadd.f32 %v1196, %v1282
        %v1295 = vadd.f32 %v1201, %v1282
        %v1296 = vadd.f32 %v1204, %v1282
        %v1297 = vadd.f32 %v1209, %v1282
        %v1298 = vadd.f32 %v1212, %v1282
        %v1299 = vadd.f32 %v1217, %v1282
        %v1300 = vadd.f32 %v1220, %v1282
        %v1301 = vadd.f32 %v1225, %v1282
        %v1302 = vadd.f32 %v1228, %v1282
        %v1303 = vadd.f32 %v1233, %v1282
        %v1304 = vadd.f32 %v1236, %v1282
        %v1305 = vadd.f32 %v1241, %v1282
        %v1306 = vadd.f32 %v1244, %v1282
        %v1307 = vadd.f32 %v1249, %v1282
        %v1308 = vadd.f32 %v1252, %v1282
        %v1309 = vadd.f32 %v1257, %v1282
        %v1310 = vadd.f32 %v1260, %v1282
        %v1311 = vadd.f32 %v1265, %v1282
        %v1312 = vadd.f32 %v1268, %v1282
        %v1313 = vadd.f32 %v1273, %v1282
        %v1314 = vadd.f32 %v1276, %v1282
        %1315 = vadd.xlane.f32.xlu0 %v1283
        %v1316 = vpop.xlane.xlu0 %1315
        %1317 = vadd.xlane.f32.xlu0 %v1284
        %v1318 = vpop.xlane.xlu0 %1317
        %1319 = vadd.xlane.f32.xlu0 %v1285
        %v1320 = vpop.xlane.xlu0 %1319
        %1321 = vadd.xlane.f32.xlu0 %v1286
        %v1322 = vpop.xlane.xlu0 %1321
        %1323 = vadd.xlane.f32.xlu0 %v1287
        %v1324 = vpop.xlane.xlu0 %1323
        %1325 = vadd.xlane.f32.xlu0 %v1288
        %v1326 = vpop.xlane.xlu0 %1325
        %1327 = vadd.xlane.f32.xlu0 %v1289
        %v1328 = vpop.xlane.xlu0 %1327
        %1329 = vadd.xlane.f32.xlu0 %v1290
        %v1330 = vpop.xlane.xlu0 %1329
        %1331 = vadd.xlane.f32.xlu0 %v1291
        %v1332 = vpop.xlane.xlu0 %1331
        %1333 = vadd.xlane.f32.xlu0 %v1292
        %v1334 = vpop.xlane.xlu0 %1333
        %1335 = vadd.xlane.f32.xlu0 %v1293
        %v1336 = vpop.xlane.xlu0 %1335
        %1337 = vadd.xlane.f32.xlu0 %v1294
        %v1338 = vpop.xlane.xlu0 %1337
        %1339 = vadd.xlane.f32.xlu0 %v1295
        %v1340 = vpop.xlane.xlu0 %1339
        %1341 = vadd.xlane.f32.xlu0 %v1296
        %v1342 = vpop.xlane.xlu0 %1341
        %1343 = vadd.xlane.f32.xlu0 %v1297
        %v1344 = vpop.xlane.xlu0 %1343
        %1345 = vadd.xlane.f32.xlu0 %v1298
        %v1346 = vpop.xlane.xlu0 %1345
        %1347 = vadd.xlane.f32.xlu0 %v1299
        %v1348 = vpop.xlane.xlu0 %1347
        %1349 = vadd.xlane.f32.xlu0 %v1300
        %v1350 = vpop.xlane.xlu0 %1349
        %1351 = vadd.xlane.f32.xlu0 %v1301
        %v1352 = vpop.xlane.xlu0 %1351
        %1353 = vadd.xlane.f32.xlu0 %v1302
        %v1354 = vpop.xlane.xlu0 %1353
        %1355 = vadd.xlane.f32.xlu0 %v1303
        %v1356 = vpop.xlane.xlu0 %1355
        %1357 = vadd.xlane.f32.xlu0 %v1304
        %v1358 = vpop.xlane.xlu0 %1357
        %1359 = vadd.xlane.f32.xlu0 %v1305
        %v1360 = vpop.xlane.xlu0 %1359
        %1361 = vadd.xlane.f32.xlu0 %v1306
        %v1362 = vpop.xlane.xlu0 %1361
        %1363 = vadd.xlane.f32.xlu0 %v1307
        %v1364 = vpop.xlane.xlu0 %1363
        %1365 = vadd.xlane.f32.xlu0 %v1308
        %v1366 = vpop.xlane.xlu0 %1365
        %1367 = vadd.xlane.f32.xlu0 %v1309
        %v1368 = vpop.xlane.xlu0 %1367
        %1369 = vadd.xlane.f32.xlu0 %v1310
        %v1370 = vpop.xlane.xlu0 %1369
        %1371 = vadd.xlane.f32.xlu0 %v1311
        %v1372 = vpop.xlane.xlu0 %1371
        %1373 = vadd.xlane.f32.xlu0 %v1312
        %v1374 = vpop.xlane.xlu0 %1373
        %1375 = vadd.xlane.f32.xlu0 %v1313
        %v1376 = vpop.xlane.xlu0 %1375
        %1377 = vadd.xlane.f32.xlu0 %v1314
        %v1378 = vpop.xlane.xlu0 %1377
        %v1379 = vrcp.pop 128.0
        %v1380 = vmul.f32 %v1316, %v1379
        %v1381 = vmul.f32 %v1318, %v1379
        %v1382 = vmul.f32 %v1320, %v1379
        %v1383 = vmul.f32 %v1322, %v1379
        %v1384 = vmul.f32 %v1324, %v1379
        %v1385 = vmul.f32 %v1326, %v1379
        %v1386 = vmul.f32 %v1328, %v1379
        %v1387 = vmul.f32 %v1330, %v1379
        %v1388 = vmul.f32 %v1332, %v1379
        %v1389 = vmul.f32 %v1334, %v1379
        %v1390 = vmul.f32 %v1336, %v1379
        %v1391 = vmul.f32 %v1338, %v1379
        %v1392 = vmul.f32 %v1340, %v1379
        %v1393 = vmul.f32 %v1342, %v1379
        %v1394 = vmul.f32 %v1344, %v1379
        %v1395 = vmul.f32 %v1346, %v1379
        %v1396 = vmul.f32 %v1348, %v1379
        %v1397 = vmul.f32 %v1350, %v1379
        %v1398 = vmul.f32 %v1352, %v1379
        %v1399 = vmul.f32 %v1354, %v1379
        %v1400 = vmul.f32 %v1356, %v1379
        %v1401 = vmul.f32 %v1358, %v1379
        %v1402 = vmul.f32 %v1360, %v1379
        %v1403 = vmul.f32 %v1362, %v1379
        %v1404 = vmul.f32 %v1364, %v1379
        %v1405 = vmul.f32 %v1366, %v1379
        %v1406 = vmul.f32 %v1368, %v1379
        %v1407 = vmul.f32 %v1370, %v1379
        %v1408 = vmul.f32 %v1372, %v1379
        %v1409 = vmul.f32 %v1374, %v1379
        %v1410 = vmul.f32 %v1376, %v1379
        %v1411 = vmul.f32 %v1378, %v1379
        %v1412 = vsub.f32 %v1283, %v1380
        %v1413 = vsub.f32 %v1284, %v1381
        %v1414 = vsub.f32 %v1285, %v1382
        %v1415 = vsub.f32 %v1286, %v1383
        %v1416 = vsub.f32 %v1287, %v1384
        %v1417 = vsub.f32 %v1288, %v1385
        %v1418 = vsub.f32 %v1289, %v1386
        %v1419 = vsub.f32 %v1290, %v1387
        %v1420 = vsub.f32 %v1291, %v1388
        %v1421 = vsub.f32 %v1292, %v1389
        %v1422 = vsub.f32 %v1293, %v1390
        %v1423 = vsub.f32 %v1294, %v1391
        %v1424 = vsub.f32 %v1295, %v1392
        %v1425 = vsub.f32 %v1296, %v1393
        %v1426 = vsub.f32 %v1297, %v1394
        %v1427 = vsub.f32 %v1298, %v1395
        %v1428 = vsub.f32 %v1299, %v1396
        %v1429 = vsub.f32 %v1300, %v1397
        %v1430 = vsub.f32 %v1301, %v1398
        %v1431 = vsub.f32 %v1302, %v1399
        %v1432 = vsub.f32 %v1303, %v1400
        %v1433 = vsub.f32 %v1304, %v1401
        %v1434 = vsub.f32 %v1305, %v1402
        %v1435 = vsub.f32 %v1306, %v1403
        %v1436 = vsub.f32 %v1307, %v1404
        %v1437 = vsub.f32 %v1308, %v1405
        %v1438 = vsub.f32 %v1309, %v1406
        %v1439 = vsub.f32 %v1310, %v1407
        %v1440 = vsub.f32 %v1311, %v1408
        %v1441 = vsub.f32 %v1312, %v1409
        %v1442 = vsub.f32 %v1313, %v1410
        %v1443 = vsub.f32 %v1314, %v1411
        %v1444 = vmul.f32 %v1412, %v1412
        %v1445 = vmul.f32 %v1413, %v1413
        %v1446 = vmul.f32 %v1414, %v1414
        %v1447 = vmul.f32 %v1415, %v1415
        %v1448 = vmul.f32 %v1416, %v1416
        %v1449 = vmul.f32 %v1417, %v1417
        %v1450 = vmul.f32 %v1418, %v1418
        %v1451 = vmul.f32 %v1419, %v1419
        %v1452 = vmul.f32 %v1420, %v1420
        %v1453 = vmul.f32 %v1421, %v1421
        %v1454 = vmul.f32 %v1422, %v1422
        %v1455 = vmul.f32 %v1423, %v1423
        %v1456 = vmul.f32 %v1424, %v1424
        %v1457 = vmul.f32 %v1425, %v1425
        %v1458 = vmul.f32 %v1426, %v1426
        %v1459 = vmul.f32 %v1427, %v1427
        %v1460 = vmul.f32 %v1428, %v1428
        %v1461 = vmul.f32 %v1429, %v1429
        %v1462 = vmul.f32 %v1430, %v1430
        %v1463 = vmul.f32 %v1431, %v1431
        %v1464 = vmul.f32 %v1432, %v1432
        %v1465 = vmul.f32 %v1433, %v1433
        %v1466 = vmul.f32 %v1434, %v1434
        %v1467 = vmul.f32 %v1435, %v1435
        %v1468 = vmul.f32 %v1436, %v1436
        %v1469 = vmul.f32 %v1437, %v1437
        %v1470 = vmul.f32 %v1438, %v1438
        %v1471 = vmul.f32 %v1439, %v1439
        %v1472 = vmul.f32 %v1440, %v1440
        %v1473 = vmul.f32 %v1441, %v1441
        %v1474 = vmul.f32 %v1442, %v1442
        %v1475 = vmul.f32 %v1443, %v1443
        %1476 = vadd.xlane.f32.xlu0 %v1444
        %v1477 = vpop.xlane.xlu0 %1476
        %1478 = vadd.xlane.f32.xlu0 %v1445
        %v1479 = vpop.xlane.xlu0 %1478
        %1480 = vadd.xlane.f32.xlu0 %v1446
        %v1481 = vpop.xlane.xlu0 %1480
        %1482 = vadd.xlane.f32.xlu0 %v1447
        %v1483 = vpop.xlane.xlu0 %1482
        %1484 = vadd.xlane.f32.xlu0 %v1448
        %v1485 = vpop.xlane.xlu0 %1484
        %1486 = vadd.xlane.f32.xlu0 %v1449
        %v1487 = vpop.xlane.xlu0 %1486
        %1488 = vadd.xlane.f32.xlu0 %v1450
        %v1489 = vpop.xlane.xlu0 %1488
        %1490 = vadd.xlane.f32.xlu0 %v1451
        %v1491 = vpop.xlane.xlu0 %1490
        %1492 = vadd.xlane.f32.xlu0 %v1452
        %v1493 = vpop.xlane.xlu0 %1492
        %1494 = vadd.xlane.f32.xlu0 %v1453
        %v1495 = vpop.xlane.xlu0 %1494
        %1496 = vadd.xlane.f32.xlu0 %v1454
        %v1497 = vpop.xlane.xlu0 %1496
        %1498 = vadd.xlane.f32.xlu0 %v1455
        %v1499 = vpop.xlane.xlu0 %1498
        %1500 = vadd.xlane.f32.xlu0 %v1456
        %v1501 = vpop.xlane.xlu0 %1500
        %1502 = vadd.xlane.f32.xlu0 %v1457
        %v1503 = vpop.xlane.xlu0 %1502
        %1504 = vadd.xlane.f32.xlu0 %v1458
        %v1505 = vpop.xlane.xlu0 %1504
        %1506 = vadd.xlane.f32.xlu0 %v1459
        %v1507 = vpop.xlane.xlu0 %1506
        %1508 = vadd.xlane.f32.xlu0 %v1460
        %v1509 = vpop.xlane.xlu0 %1508
        %1510 = vadd.xlane.f32.xlu0 %v1461
        %v1511 = vpop.xlane.xlu0 %1510
        %1512 = vadd.xlane.f32.xlu0 %v1462
        %v1513 = vpop.xlane.xlu0 %1512
        %1514 = vadd.xlane.f32.xlu0 %v1463
        %v1515 = vpop.xlane.xlu0 %1514
        %1516 = vadd.xlane.f32.xlu0 %v1464
        %v1517 = vpop.xlane.xlu0 %1516
        %1518 = vadd.xlane.f32.xlu0 %v1465
        %v1519 = vpop.xlane.xlu0 %1518
        %1520 = vadd.xlane.f32.xlu0 %v1466
        %v1521 = vpop.xlane.xlu0 %1520
        %1522 = vadd.xlane.f32.xlu0 %v1467
        %v1523 = vpop.xlane.xlu0 %1522
        %1524 = vadd.xlane.f32.xlu0 %v1468
        %v1525 = vpop.xlane.xlu0 %1524
        %1526 = vadd.xlane.f32.xlu0 %v1469
        %v1527 = vpop.xlane.xlu0 %1526
        %1528 = vadd.xlane.f32.xlu0 %v1470
        %v1529 = vpop.xlane.xlu0 %1528
        %1530 = vadd.xlane.f32.xlu0 %v1471
        %v1531 = vpop.xlane.xlu0 %1530
        %1532 = vadd.xlane.f32.xlu0 %v1472
        %v1533 = vpop.xlane.xlu0 %1532
        %1534 = vadd.xlane.f32.xlu0 %v1473
        %v1535 = vpop.xlane.xlu0 %1534
        %1536 = vadd.xlane.f32.xlu0 %v1474
        %v1537 = vpop.xlane.xlu0 %1536
        %1538 = vadd.xlane.f32.xlu0 %v1475
        %v1539 = vpop.xlane.xlu0 %1538
        %v1540 = vmul.f32 %v1477, %v1379
        %v1541 = vmul.f32 %v1479, %v1379
        %v1542 = vmul.f32 %v1481, %v1379
        %v1543 = vmul.f32 %v1483, %v1379
        %v1544 = vmul.f32 %v1485, %v1379
        %v1545 = vmul.f32 %v1487, %v1379
        %v1546 = vmul.f32 %v1489, %v1379
        %v1547 = vmul.f32 %v1491, %v1379
        %v1548 = vmul.f32 %v1493, %v1379
        %v1549 = vmul.f32 %v1495, %v1379
        %v1550 = vmul.f32 %v1497, %v1379
        %v1551 = vmul.f32 %v1499, %v1379
        %v1552 = vmul.f32 %v1501, %v1379
        %v1553 = vmul.f32 %v1503, %v1379
        %v1554 = vmul.f32 %v1505, %v1379
        %v1555 = vmul.f32 %v1507, %v1379
        %v1556 = vmul.f32 %v1509, %v1379
        %v1557 = vmul.f32 %v1511, %v1379
        %v1558 = vmul.f32 %v1513, %v1379
        %v1559 = vmul.f32 %v1515, %v1379
        %v1560 = vmul.f32 %v1517, %v1379
        %v1561 = vmul.f32 %v1519, %v1379
        %v1562 = vmul.f32 %v1521, %v1379
        %v1563 = vmul.f32 %v1523, %v1379
        %v1564 = vmul.f32 %v1525, %v1379
        %v1565 = vmul.f32 %v1527, %v1379
        %v1566 = vmul.f32 %v1529, %v1379
        %v1567 = vmul.f32 %v1531, %v1379
        %v1568 = vmul.f32 %v1533, %v1379
        %v1569 = vmul.f32 %v1535, %v1379
        %v1570 = vmul.f32 %v1537, %v1379
        %v1571 = vmul.f32 %v1539, %v1379
        %v1572 = vadd.f32 %v1540, 1e-05
        %v1573 = vadd.f32 %v1541, 1e-05
        %v1574 = vadd.f32 %v1542, 1e-05
        %v1575 = vadd.f32 %v1543, 1e-05
        %v1576 = vadd.f32 %v1544, 1e-05
        %v1577 = vadd.f32 %v1545, 1e-05
        %v1578 = vadd.f32 %v1546, 1e-05
        %v1579 = vadd.f32 %v1547, 1e-05
        %v1580 = vadd.f32 %v1548, 1e-05
        %v1581 = vadd.f32 %v1549, 1e-05
        %v1582 = vadd.f32 %v1550, 1e-05
        %v1583 = vadd.f32 %v1551, 1e-05
        %v1584 = vadd.f32 %v1552, 1e-05
        %v1585 = vadd.f32 %v1553, 1e-05
        %v1586 = vadd.f32 %v1554, 1e-05
        %v1587 = vadd.f32 %v1555, 1e-05
        %v1588 = vadd.f32 %v1556, 1e-05
        %v1589 = vadd.f32 %v1557, 1e-05
        %v1590 = vadd.f32 %v1558, 1e-05
        %v1591 = vadd.f32 %v1559, 1e-05
        %v1592 = vadd.f32 %v1560, 1e-05
        %v1593 = vadd.f32 %v1561, 1e-05
        %v1594 = vadd.f32 %v1562, 1e-05
        %v1595 = vadd.f32 %v1563, 1e-05
        %v1596 = vadd.f32 %v1564, 1e-05
        %v1597 = vadd.f32 %v1565, 1e-05
        %v1598 = vadd.f32 %v1566, 1e-05
        %v1599 = vadd.f32 %v1567, 1e-05
        %v1600 = vadd.f32 %v1568, 1e-05
        %v1601 = vadd.f32 %v1569, 1e-05
        %v1602 = vadd.f32 %v1570, 1e-05
        %v1603 = vadd.f32 %v1571, 1e-05
        %v1604 = vrsqrt.pop %v1572
        %v1605 = vrsqrt.pop %v1573
        %v1606 = vrsqrt.pop %v1574
        %v1607 = vrsqrt.pop %v1575
        %v1608 = vrsqrt.pop %v1576
        %v1609 = vrsqrt.pop %v1577
        %v1610 = vrsqrt.pop %v1578
        %v1611 = vrsqrt.pop %v1579
        %v1612 = vrsqrt.pop %v1580
        %v1613 = vrsqrt.pop %v1581
        %v1614 = vrsqrt.pop %v1582
        %v1615 = vrsqrt.pop %v1583
        %v1616 = vrsqrt.pop %v1584
        %v1617 = vrsqrt.pop %v1585
        %v1618 = vrsqrt.pop %v1586
        %v1619 = vrsqrt.pop %v1587
        %v1620 = vrsqrt.pop %v1588
        %v1621 = vrsqrt.pop %v1589
        %v1622 = vrsqrt.pop %v1590
        %v1623 = vrsqrt.pop %v1591
        %v1624 = vrsqrt.pop %v1592
        %v1625 = vrsqrt.pop %v1593
        %v1626 = vrsqrt.pop %v1594
        %v1627 = vrsqrt.pop %v1595
        %v1628 = vrsqrt.pop %v1596
        %v1629 = vrsqrt.pop %v1597
        %v1630 = vrsqrt.pop %v1598
        %v1631 = vrsqrt.pop %v1599
        %v1632 = vrsqrt.pop %v1600
        %v1633 = vrsqrt.pop %v1601
        %v1634 = vrsqrt.pop %v1602
        %v1635 = vrsqrt.pop %v1603
        %v1636 = vmul.f32 %v1412, %v1604
        %v1637 = vmul.f32 %v1413, %v1605
        %v1638 = vmul.f32 %v1414, %v1606
        %v1639 = vmul.f32 %v1415, %v1607
        %v1640 = vmul.f32 %v1416, %v1608
        %v1641 = vmul.f32 %v1417, %v1609
        %v1642 = vmul.f32 %v1418, %v1610
        %v1643 = vmul.f32 %v1419, %v1611
        %v1644 = vmul.f32 %v1420, %v1612
        %v1645 = vmul.f32 %v1421, %v1613
        %v1646 = vmul.f32 %v1422, %v1614
        %v1647 = vmul.f32 %v1423, %v1615
        %v1648 = vmul.f32 %v1424, %v1616
        %v1649 = vmul.f32 %v1425, %v1617
        %v1650 = vmul.f32 %v1426, %v1618
        %v1651 = vmul.f32 %v1427, %v1619
        %v1652 = vmul.f32 %v1428, %v1620
        %v1653 = vmul.f32 %v1429, %v1621
        %v1654 = vmul.f32 %v1430, %v1622
        %v1655 = vmul.f32 %v1431, %v1623
        %v1656 = vmul.f32 %v1432, %v1624
        %v1657 = vmul.f32 %v1433, %v1625
        %v1658 = vmul.f32 %v1434, %v1626
        %v1659 = vmul.f32 %v1435, %v1627
        %v1660 = vmul.f32 %v1436, %v1628
        %v1661 = vmul.f32 %v1437, %v1629
        %v1662 = vmul.f32 %v1438, %v1630
        %v1663 = vmul.f32 %v1439, %v1631
        %v1664 = vmul.f32 %v1440, %v1632
        %v1665 = vmul.f32 %v1441, %v1633
        %v1666 = vmul.f32 %v1442, %v1634
        %v1667 = vmul.f32 %v1443, %v1635
        %v1668 = vlaneseq
        %v1669 = vshrl.u32 %v1668, 7
        %v1670 = vsub.s32 1, %v1669
        %v1671 = vrot.slane %v796, %v1670
        %v1672 = vmul.f32 %v1636, %v1671
        %v1673 = vmul.f32 %v1637, %v1671
        %v1674 = vmul.f32 %v1638, %v1671
        %v1675 = vmul.f32 %v1639, %v1671
        %v1676 = vmul.f32 %v1640, %v1671
        %v1677 = vmul.f32 %v1641, %v1671
        %v1678 = vmul.f32 %v1642, %v1671
        %v1679 = vmul.f32 %v1643, %v1671
        %v1680 = vmul.f32 %v1644, %v1671
        %v1681 = vmul.f32 %v1645, %v1671
        %v1682 = vmul.f32 %v1646, %v1671
        %v1683 = vmul.f32 %v1647, %v1671
        %v1684 = vmul.f32 %v1648, %v1671
        %v1685 = vmul.f32 %v1649, %v1671
        %v1686 = vmul.f32 %v1650, %v1671
        %v1687 = vmul.f32 %v1651, %v1671
        %v1688 = vmul.f32 %v1652, %v1671
        %v1689 = vmul.f32 %v1653, %v1671
        %v1690 = vmul.f32 %v1654, %v1671
        %v1691 = vmul.f32 %v1655, %v1671
        %v1692 = vmul.f32 %v1656, %v1671
        %v1693 = vmul.f32 %v1657, %v1671
        %v1694 = vmul.f32 %v1658, %v1671
        %v1695 = vmul.f32 %v1659, %v1671
        %v1696 = vmul.f32 %v1660, %v1671
        %v1697 = vmul.f32 %v1661, %v1671
        %v1698 = vmul.f32 %v1662, %v1671
        %v1699 = vmul.f32 %v1663, %v1671
        %v1700 = vmul.f32 %v1664, %v1671
        %v1701 = vmul.f32 %v1665, %v1671
        %v1702 = vmul.f32 %v1666, %v1671
        %v1703 = vmul.f32 %v1667, %v1671
        %v1704 = vlaneseq
        %v1705 = vshrl.u32 %v1704, 7
        %v1706 = vsub.s32 2, %v1705
        %v1707 = vrot.slane %v796, %v1706
        %v1708 = vadd.f32 %v1672, %v1707
        %v1709 = vadd.f32 %v1673, %v1707
        %v1710 = vadd.f32 %v1674, %v1707
        %v1711 = vadd.f32 %v1675, %v1707
        %v1712 = vadd.f32 %v1676, %v1707
        %v1713 = vadd.f32 %v1677, %v1707
        %v1714 = vadd.f32 %v1678, %v1707
        %v1715 = vadd.f32 %v1679, %v1707
        %v1716 = vadd.f32 %v1680, %v1707
        %v1717 = vadd.f32 %v1681, %v1707
        %v1718 = vadd.f32 %v1682, %v1707
        %v1719 = vadd.f32 %v1683, %v1707
        %v1720 = vadd.f32 %v1684, %v1707
        %v1721 = vadd.f32 %v1685, %v1707
        %v1722 = vadd.f32 %v1686, %v1707
        %v1723 = vadd.f32 %v1687, %v1707
        %v1724 = vadd.f32 %v1688, %v1707
        %v1725 = vadd.f32 %v1689, %v1707
        %v1726 = vadd.f32 %v1690, %v1707
        %v1727 = vadd.f32 %v1691, %v1707
        %v1728 = vadd.f32 %v1692, %v1707
        %v1729 = vadd.f32 %v1693, %v1707
        %v1730 = vadd.f32 %v1694, %v1707
        %v1731 = vadd.f32 %v1695, %v1707
        %v1732 = vadd.f32 %v1696, %v1707
        %v1733 = vadd.f32 %v1697, %v1707
        %v1734 = vadd.f32 %v1698, %v1707
        %v1735 = vadd.f32 %v1699, %v1707
        %v1736 = vadd.f32 %v1700, %v1707
        %v1737 = vadd.f32 %v1701, %v1707
        %v1738 = vadd.f32 %v1702, %v1707
        %v1739 = vadd.f32 %v1703, %v1707
        %v1740 = vmul.f32 %v1708, 0.5
        %v1741 = vmul.f32 %v1709, 0.5
        %v1742 = vmul.f32 %v1710, 0.5
        %v1743 = vmul.f32 %v1711, 0.5
        %v1744 = vmul.f32 %v1712, 0.5
        %v1745 = vmul.f32 %v1713, 0.5
        %v1746 = vmul.f32 %v1714, 0.5
        %v1747 = vmul.f32 %v1715, 0.5
        %v1748 = vmul.f32 %v1716, 0.5
        %v1749 = vmul.f32 %v1717, 0.5
        %v1750 = vmul.f32 %v1718, 0.5
        %v1751 = vmul.f32 %v1719, 0.5
        %v1752 = vmul.f32 %v1720, 0.5
        %v1753 = vmul.f32 %v1721, 0.5
        %v1754 = vmul.f32 %v1722, 0.5
        %v1755 = vmul.f32 %v1723, 0.5
        %v1756 = vmul.f32 %v1724, 0.5
        %v1757 = vmul.f32 %v1725, 0.5
        %v1758 = vmul.f32 %v1726, 0.5
        %v1759 = vmul.f32 %v1727, 0.5
        %v1760 = vmul.f32 %v1728, 0.5
        %v1761 = vmul.f32 %v1729, 0.5
        %v1762 = vmul.f32 %v1730, 0.5
        %v1763 = vmul.f32 %v1731, 0.5
        %v1764 = vmul.f32 %v1732, 0.5
        %v1765 = vmul.f32 %v1733, 0.5
        %v1766 = vmul.f32 %v1734, 0.5
        %v1767 = vmul.f32 %v1735, 0.5
        %v1768 = vmul.f32 %v1736, 0.5
        %v1769 = vmul.f32 %v1737, 0.5
        %v1770 = vmul.f32 %v1738, 0.5
        %v1771 = vmul.f32 %v1739, 0.5
        %v1772 = vmul.f32 %v1708, 0.70710677
        %v1773 = vmul.f32 %v1709, 0.70710677
        %v1774 = vmul.f32 %v1710, 0.70710677
        %v1775 = vmul.f32 %v1711, 0.70710677
        %v1776 = vmul.f32 %v1712, 0.70710677
        %v1777 = vmul.f32 %v1713, 0.70710677
        %v1778 = vmul.f32 %v1714, 0.70710677
        %v1779 = vmul.f32 %v1715, 0.70710677
        %v1780 = vmul.f32 %v1716, 0.70710677
        %v1781 = vmul.f32 %v1717, 0.70710677
        %v1782 = vmul.f32 %v1718, 0.70710677
        %v1783 = vmul.f32 %v1719, 0.70710677
        %v1784 = vmul.f32 %v1720, 0.70710677
        %v1785 = vmul.f32 %v1721, 0.70710677
        %v1786 = vmul.f32 %v1722, 0.70710677
        %v1787 = vmul.f32 %v1723, 0.70710677
        %v1788 = vmul.f32 %v1724, 0.70710677
        %v1789 = vmul.f32 %v1725, 0.70710677
        %v1790 = vmul.f32 %v1726, 0.70710677
        %v1791 = vmul.f32 %v1727, 0.70710677
        %v1792 = vmul.f32 %v1728, 0.70710677
        %v1793 = vmul.f32 %v1729, 0.70710677
        %v1794 = vmul.f32 %v1730, 0.70710677
        %v1795 = vmul.f32 %v1731, 0.70710677
        %v1796 = vmul.f32 %v1732, 0.70710677
        %v1797 = vmul.f32 %v1733, 0.70710677
        %v1798 = vmul.f32 %v1734, 0.70710677
        %v1799 = vmul.f32 %v1735, 0.70710677
        %v1800 = vmul.f32 %v1736, 0.70710677
        %v1801 = vmul.f32 %v1737, 0.70710677
        %v1802 = vmul.f32 %v1738, 0.70710677
        %v1803 = vmul.f32 %v1739, 0.70710677
        %v1804 = verf.f32.pop %v1772
        %v1805 = verf.f32.pop %v1773
        %v1806 = verf.f32.pop %v1774
        %v1807 = verf.f32.pop %v1775
        %v1808 = verf.f32.pop %v1776
        %v1809 = verf.f32.pop %v1777
        %v1810 = verf.f32.pop %v1778
        %v1811 = verf.f32.pop %v1779
        %v1812 = verf.f32.pop %v1780
        %v1813 = verf.f32.pop %v1781
        %v1814 = verf.f32.pop %v1782
        %v1815 = verf.f32.pop %v1783
        %v1816 = verf.f32.pop %v1784
        %v1817 = verf.f32.pop %v1785
        %v1818 = verf.f32.pop %v1786
        %v1819 = verf.f32.pop %v1787
        %v1820 = verf.f32.pop %v1788
        %v1821 = verf.f32.pop %v1789
        %v1822 = verf.f32.pop %v1790
        %v1823 = verf.f32.pop %v1791
        %v1824 = verf.f32.pop %v1792
        %v1825 = verf.f32.pop %v1793
        %v1826 = verf.f32.pop %v1794
        %v1827 = verf.f32.pop %v1795
        %v1828 = verf.f32.pop %v1796
        %v1829 = verf.f32.pop %v1797
        %v1830 = verf.f32.pop %v1798
        %v1831 = verf.f32.pop %v1799
        %v1832 = verf.f32.pop %v1800
        %v1833 = verf.f32.pop %v1801
        %v1834 = verf.f32.pop %v1802
        %v1835 = verf.f32.pop %v1803
        %v1836 = vadd.f32 %v1804, 1.0
        %v1837 = vadd.f32 %v1805, 1.0
        %v1838 = vadd.f32 %v1806, 1.0
        %v1839 = vadd.f32 %v1807, 1.0
        %v1840 = vadd.f32 %v1808, 1.0
        %v1841 = vadd.f32 %v1809, 1.0
        %v1842 = vadd.f32 %v1810, 1.0
        %v1843 = vadd.f32 %v1811, 1.0
        %v1844 = vadd.f32 %v1812, 1.0
        %v1845 = vadd.f32 %v1813, 1.0
        %v1846 = vadd.f32 %v1814, 1.0
        %v1847 = vadd.f32 %v1815, 1.0
        %v1848 = vadd.f32 %v1816, 1.0
        %v1849 = vadd.f32 %v1817, 1.0
        %v1850 = vadd.f32 %v1818, 1.0
        %v1851 = vadd.f32 %v1819, 1.0
        %v1852 = vadd.f32 %v1820, 1.0
        %v1853 = vadd.f32 %v1821, 1.0
        %v1854 = vadd.f32 %v1822, 1.0
        %v1855 = vadd.f32 %v1823, 1.0
        %v1856 = vadd.f32 %v1824, 1.0
        %v1857 = vadd.f32 %v1825, 1.0
        %v1858 = vadd.f32 %v1826, 1.0
        %v1859 = vadd.f32 %v1827, 1.0
        %v1860 = vadd.f32 %v1828, 1.0
        %v1861 = vadd.f32 %v1829, 1.0
        %v1862 = vadd.f32 %v1830, 1.0
        %v1863 = vadd.f32 %v1831, 1.0
        %v1864 = vadd.f32 %v1832, 1.0
        %v1865 = vadd.f32 %v1833, 1.0
        %v1866 = vadd.f32 %v1834, 1.0
        %v1867 = vadd.f32 %v1835, 1.0
        %v1868 = vmul.f32 %v1740, %v1836
        %v1869 = vmul.f32 %v1741, %v1837
        %v1870 = vmul.f32 %v1742, %v1838
        %v1871 = vmul.f32 %v1743, %v1839
        %v1872 = vmul.f32 %v1744, %v1840
        %v1873 = vmul.f32 %v1745, %v1841
        %v1874 = vmul.f32 %v1746, %v1842
        %v1875 = vmul.f32 %v1747, %v1843
        %v1876 = vmul.f32 %v1748, %v1844
        %v1877 = vmul.f32 %v1749, %v1845
        %v1878 = vmul.f32 %v1750, %v1846
        %v1879 = vmul.f32 %v1751, %v1847
        %v1880 = vmul.f32 %v1752, %v1848
        %v1881 = vmul.f32 %v1753, %v1849
        %v1882 = vmul.f32 %v1754, %v1850
        %v1883 = vmul.f32 %v1755, %v1851
        %v1884 = vmul.f32 %v1756, %v1852
        %v1885 = vmul.f32 %v1757, %v1853
        %v1886 = vmul.f32 %v1758, %v1854
        %v1887 = vmul.f32 %v1759, %v1855
        %v1888 = vmul.f32 %v1760, %v1856
        %v1889 = vmul.f32 %v1761, %v1857
        %v1890 = vmul.f32 %v1762, %v1858
        %v1891 = vmul.f32 %v1763, %v1859
        %v1892 = vmul.f32 %v1764, %v1860
        %v1893 = vmul.f32 %v1765, %v1861
        %v1894 = vmul.f32 %v1766, %v1862
        %v1895 = vmul.f32 %v1767, %v1863
        %v1896 = vmul.f32 %v1768, %v1864
        %v1897 = vmul.f32 %v1769, %v1865
        %v1898 = vmul.f32 %v1770, %v1866
        %v1899 = vmul.f32 %v1771, %v1867
        %v1900 = vpack.c.bf16 %v1869, %v1868
        %v1901 = vpack.c.bf16 %v1871, %v1870
        %v1902 = vpack.c.bf16 %v1873, %v1872
        %v1903 = vpack.c.bf16 %v1875, %v1874
        %v1904 = vpack.c.bf16 %v1877, %v1876
        %v1905 = vpack.c.bf16 %v1879, %v1878
        %v1906 = vpack.c.bf16 %v1881, %v1880
        %v1907 = vpack.c.bf16 %v1883, %v1882
        %v1908 = vpack.c.bf16 %v1885, %v1884
        %v1909 = vpack.c.bf16 %v1887, %v1886
        %v1910 = vpack.c.bf16 %v1889, %v1888
        %v1911 = vpack.c.bf16 %v1891, %v1890
        %v1912 = vpack.c.bf16 %v1893, %v1892
        %v1913 = vpack.c.bf16 %v1895, %v1894
        %v1914 = vpack.c.bf16 %v1897, %v1896
        %v1915 = vpack.c.bf16 %v1899, %v1898
        %v1916 = vld [vmem:[#allocation8] sm:$0xf]
        %v1917 = vld [vmem:[#allocation8 + $0x4] sm:$0xf]
        %v1918 = vld [vmem:[#allocation8 + $0x8] sm:$0xf]
        %v1919 = vld [vmem:[#allocation8 + $0xc] sm:$0xf]
        %v1920 = vld [vmem:[#allocation8 + $0x10] sm:$0xf]
        %v1921 = vld [vmem:[#allocation8 + $0x14] sm:$0xf]
        %v1922 = vld [vmem:[#allocation8 + $0x18] sm:$0xf]
        %v1923 = vld [vmem:[#allocation8 + $0x1c] sm:$0xf]
        %v1924 = vld [vmem:[#allocation8 + $0x20] sm:$0xf]
        %v1925 = vld [vmem:[#allocation8 + $0x24] sm:$0xf]
        %v1926 = vld [vmem:[#allocation8 + $0x28] sm:$0xf]
        %v1927 = vld [vmem:[#allocation8 + $0x2c] sm:$0xf]
        %v1928 = vld [vmem:[#allocation8 + $0x30] sm:$0xf]
        %v1929 = vld [vmem:[#allocation8 + $0x34] sm:$0xf]
        %v1930 = vld [vmem:[#allocation8 + $0x38] sm:$0xf]
        %v1931 = vld [vmem:[#allocation8 + $0x3c] sm:$0xf]
        %v1932 = vlaneseq
        %v1933 = vshrl.u32 %v1932, 7
        %v1934 = vsub.s32 3, %v1933
        %v1935 = vrot.slane %v796, %v1934
        %v1952 = vunpack.c.l.b16 %v1916
        %v1953 = vunpack.c.l.b16 %v1917
        %v1954 = vunpack.c.l.b16 %v1918
        %v1955 = vunpack.c.l.b16 %v1919
        %v1956 = vunpack.c.l.b16 %v1920
        %v1957 = vunpack.c.l.b16 %v1921
        %v1958 = vunpack.c.l.b16 %v1922
        %v1959 = vunpack.c.l.b16 %v1923
        %v1960 = vunpack.c.l.b16 %v1924
        %v1961 = vunpack.c.l.b16 %v1925
        %v1962 = vunpack.c.l.b16 %v1926
        %v1963 = vunpack.c.l.b16 %v1927
        %v1964 = vunpack.c.l.b16 %v1928
        %v1965 = vunpack.c.l.b16 %v1929
        %v1966 = vunpack.c.l.b16 %v1930
        %v1967 = vunpack.c.l.b16 %v1931
        %v1968 = vpack.c.b16 %v1953, %v1952
        %v1969 = vpack.c.b16 %v1955, %v1954
        %v1970 = vpack.c.b16 %v1957, %v1956
        %v1971 = vpack.c.b16 %v1959, %v1958
        %v1972 = vpack.c.b16 %v1961, %v1960
        %v1973 = vpack.c.b16 %v1963, %v1962
        %v1974 = vpack.c.b16 %v1965, %v1964
        %v1975 = vpack.c.b16 %v1967, %v1966
        %1984 = vmatprep.subr.bf16.mxu0 0
        %1985 = vmatpush1.bf16.msra.mxu0 %v1968
        %1986 = vmatprep.subr.bf16.mxu0 0
        %1987 = vmatpush1.bf16.msra.mxu0 %v1969
        %1988 = vmatprep.subr.bf16.mxu0 0
        %1989 = vmatpush1.bf16.msra.mxu0 %v1970
        %1990 = vmatprep.subr.bf16.mxu0 0
        %1991 = vmatpush1.bf16.msra.mxu0 %v1971
        %1992 = vmatprep.subr.bf16.mxu0 0
        %1993 = vmatpush1.bf16.msra.mxu0 %v1972
        %1994 = vmatprep.subr.bf16.mxu0 0
        %1995 = vmatpush1.bf16.msra.mxu0 %v1973
        %1996 = vmatprep.subr.bf16.mxu0 0
        %1997 = vmatpush1.bf16.msra.mxu0 %v1974
        %1998 = vmatprep.subr.bf16.mxu0 0
        %1999 = vmatpush1.bf16.msra.mxu0 %v1975
        %2000 = vmatprep.subr.bf16.mxu0 0
        %2001 = vmatpush1.bf16.msra.mxu0 0
        %2002 = vmatprep.subr.bf16.mxu0 0
        %2003 = vmatpush1.bf16.msra.mxu0 0
        %2004 = vmatprep.subr.bf16.mxu0 0
        %2005 = vmatpush1.bf16.msra.mxu0 0
        %2006 = vmatprep.subr.bf16.mxu0 0
        %2007 = vmatpush1.bf16.msra.mxu0 0
        %2008 = vmatprep.subr.bf16.mxu0 0
        %2009 = vmatpush1.bf16.msra.mxu0 0
        %2010 = vmatprep.subr.bf16.mxu0 0
        %2011 = vmatpush1.bf16.msra.mxu0 0
        %2012 = vmatprep.subr.bf16.mxu0 0
        %2013 = vmatpush1.bf16.msra.mxu0 0
        %2014 = vmatprep.subr.bf16.mxu0 0
        %2015 = vmatpush1.bf16.msra.mxu0 0
        %2016 = vmatprep.mubr.bf16.mxu0 0
        %2017 = vmatmul.mubr.bf16.gmra.mrb[0].mxu0 %v1900
        %v2018 = vpop.f32.mrb[0].mxu0
        %v2019 = vadd.f32 %v1935, %v2018
        %v2020 = vpop.f32.mrb[0].mxu0
        %v2021 = vpop.f32.mrb[0].mxu0
        %v2022 = vadd.f32 %v1935, %v2021
        %v2023 = vpop.f32.mrb[0].mxu0
        %2024 = vmatprep.mubr.bf16.mxu0 0
        %2025 = vmatmul.mubr.bf16.gmra.mrb[0].mxu0 %v1901
        %v2026 = vpop.f32.mrb[0].mxu0
        %v2027 = vadd.f32 %v1935, %v2026
        %v2028 = vpop.f32.mrb[0].mxu0
        %v2029 = vpop.f32.mrb[0].mxu0
        %v2030 = vadd.f32 %v1935, %v2029
        %v2031 = vpop.f32.mrb[0].mxu0
        %2032 = vmatprep.mubr.bf16.mxu0 0
        %2033 = vmatmul.mubr.bf16.gmra.mrb[0].mxu0 %v1902
        %v2034 = vpop.f32.mrb[0].mxu0
        %v2035 = vadd.f32 %v1935, %v2034
        %v2036 = vpop.f32.mrb[0].mxu0
        %v2037 = vpop.f32.mrb[0].mxu0
        %v2038 = vadd.f32 %v1935, %v2037
        %v2039 = vpop.f32.mrb[0].mxu0
        %2040 = vmatprep.mubr.bf16.mxu0 0
        %2041 = vmatmul.mubr.bf16.gmra.mrb[0].mxu0 %v1903
        %v2042 = vpop.f32.mrb[0].mxu0
        %v2043 = vadd.f32 %v1935, %v2042
        %v2044 = vpop.f32.mrb[0].mxu0
        %v2045 = vpop.f32.mrb[0].mxu0
        %v2046 = vadd.f32 %v1935, %v2045
        %v2047 = vpop.f32.mrb[0].mxu0
        %2048 = vmatprep.mubr.bf16.mxu0 0
        %2049 = vmatmul.mubr.bf16.gmra.mrb[0].mxu0 %v1904
        %v2050 = vpop.f32.mrb[0].mxu0
        %v2051 = vadd.f32 %v1935, %v2050
        %v2052 = vpop.f32.mrb[0].mxu0
        %v2053 = vpop.f32.mrb[0].mxu0
        %v2054 = vadd.f32 %v1935, %v2053
        %v2055 = vpop.f32.mrb[0].mxu0
        %2056 = vmatprep.mubr.bf16.mxu0 0
        %2057 = vmatmul.mubr.bf16.gmra.mrb[0].mxu0 %v1905
        %v2058 = vpop.f32.mrb[0].mxu0
        %v2059 = vadd.f32 %v1935, %v2058
        %v2060 = vpop.f32.mrb[0].mxu0
        %v2061 = vpop.f32.mrb[0].mxu0
        %v2062 = vadd.f32 %v1935, %v2061
        %v2063 = vpop.f32.mrb[0].mxu0
        %2064 = vmatprep.mubr.bf16.mxu0 0
        %2065 = vmatmul.mubr.bf16.gmra.mrb[0].mxu0 %v1906
        %v2066 = vpop.f32.mrb[0].mxu0
        %v2067 = vadd.f32 %v1935, %v2066
        %v2068 = vpop.f32.mrb[0].mxu0
        %v2069 = vpop.f32.mrb[0].mxu0
        %v2070 = vadd.f32 %v1935, %v2069
        %v2071 = vpop.f32.mrb[0].mxu0
        %2072 = vmatprep.mubr.bf16.mxu0 0
        %2073 = vmatmul.mubr.bf16.gmra.mrb[0].mxu0 %v1907
        %v2074 = vpop.f32.mrb[0].mxu0
        %v2075 = vadd.f32 %v1935, %v2074
        %v2076 = vpop.f32.mrb[0].mxu0
        %v2077 = vpop.f32.mrb[0].mxu0
        %v2078 = vadd.f32 %v1935, %v2077
        %v2079 = vpop.f32.mrb[0].mxu0
        %2080 = vmatprep.mubr.bf16.mxu0 0
        %2081 = vmatmul.mubr.bf16.gmra.mrb[0].mxu0 %v1908
        %v2082 = vpop.f32.mrb[0].mxu0
        %v2083 = vadd.f32 %v1935, %v2082
        %v2084 = vpop.f32.mrb[0].mxu0
        %v2085 = vpop.f32.mrb[0].mxu0
        %v2086 = vadd.f32 %v1935, %v2085
        %v2087 = vpop.f32.mrb[0].mxu0
        %2088 = vmatprep.mubr.bf16.mxu0 0
        %2089 = vmatmul.mubr.bf16.gmra.mrb[0].mxu0 %v1909
        %v2090 = vpop.f32.mrb[0].mxu0
        %v2091 = vadd.f32 %v1935, %v2090
        %v2092 = vpop.f32.mrb[0].mxu0
        %v2093 = vpop.f32.mrb[0].mxu0
        %v2094 = vadd.f32 %v1935, %v2093
        %v2095 = vpop.f32.mrb[0].mxu0
        %2096 = vmatprep.mubr.bf16.mxu0 0
        %2097 = vmatmul.mubr.bf16.gmra.mrb[0].mxu0 %v1910
        %v2098 = vpop.f32.mrb[0].mxu0
        %v2099 = vadd.f32 %v1935, %v2098
        %v2100 = vpop.f32.mrb[0].mxu0
        %v2101 = vpop.f32.mrb[0].mxu0
        %v2102 = vadd.f32 %v1935, %v2101
        %v2103 = vpop.f32.mrb[0].mxu0
        %2104 = vmatprep.mubr.bf16.mxu0 0
        %2105 = vmatmul.mubr.bf16.gmra.mrb[0].mxu0 %v1911
        %v2106 = vpop.f32.mrb[0].mxu0
        %v2107 = vadd.f32 %v1935, %v2106
        %v2108 = vpop.f32.mrb[0].mxu0
        %v2109 = vpop.f32.mrb[0].mxu0
        %v2110 = vadd.f32 %v1935, %v2109
        %v2111 = vpop.f32.mrb[0].mxu0
        %2112 = vmatprep.mubr.bf16.mxu0 0
        %2113 = vmatmul.mubr.bf16.gmra.mrb[0].mxu0 %v1912
        %v2114 = vpop.f32.mrb[0].mxu0
        %v2115 = vadd.f32 %v1935, %v2114
        %v2116 = vpop.f32.mrb[0].mxu0
        %v2117 = vpop.f32.mrb[0].mxu0
        %v2118 = vadd.f32 %v1935, %v2117
        %v2119 = vpop.f32.mrb[0].mxu0
        %2120 = vmatprep.mubr.bf16.mxu0 0
        %2121 = vmatmul.mubr.bf16.gmra.mrb[0].mxu0 %v1913
        %v2122 = vpop.f32.mrb[0].mxu0
        %v2123 = vadd.f32 %v1935, %v2122
        %v2124 = vpop.f32.mrb[0].mxu0
        %v2125 = vpop.f32.mrb[0].mxu0
        %v2126 = vadd.f32 %v1935, %v2125
        %v2127 = vpop.f32.mrb[0].mxu0
        %2128 = vmatprep.mubr.bf16.mxu0 0
        %2129 = vmatmul.mubr.bf16.gmra.mrb[0].mxu0 %v1914
        %v2130 = vpop.f32.mrb[0].mxu0
        %v2131 = vadd.f32 %v1935, %v2130
        %v2132 = vpop.f32.mrb[0].mxu0
        %v2133 = vpop.f32.mrb[0].mxu0
        %v2134 = vadd.f32 %v1935, %v2133
        %v2135 = vpop.f32.mrb[0].mxu0
        %2136 = vmatprep.mubr.bf16.mxu0 0
        %2137 = vmatmul.mubr.bf16.gmra.mrb[0].mxu0 %v1915
        %v2138 = vpop.f32.mrb[0].mxu0
        %v2139 = vadd.f32 %v1935, %v2138
        %v2140 = vpop.f32.mrb[0].mxu0
        %v2141 = vpop.f32.mrb[0].mxu0
        %v2142 = vadd.f32 %v1935, %v2141
        %v2143 = vpop.f32.mrb[0].mxu0
        %2144 = vdwg.mxu0
        %v2145 = vxor.u32 %v2019, 2147483648
        %v2146 = vxor.u32 %v2022, 2147483648
        %v2147 = vxor.u32 %v2027, 2147483648
        %v2148 = vxor.u32 %v2030, 2147483648
        %v2149 = vxor.u32 %v2035, 2147483648
        %v2150 = vxor.u32 %v2038, 2147483648
        %v2151 = vxor.u32 %v2043, 2147483648
        %v2152 = vxor.u32 %v2046, 2147483648
        %v2153 = vxor.u32 %v2051, 2147483648
        %v2154 = vxor.u32 %v2054, 2147483648
        %v2155 = vxor.u32 %v2059, 2147483648
        %v2156 = vxor.u32 %v2062, 2147483648
        %v2157 = vxor.u32 %v2067, 2147483648
        %v2158 = vxor.u32 %v2070, 2147483648
        %v2159 = vxor.u32 %v2075, 2147483648
        %v2160 = vxor.u32 %v2078, 2147483648
        %v2161 = vxor.u32 %v2083, 2147483648
        %v2162 = vxor.u32 %v2086, 2147483648
        %v2163 = vxor.u32 %v2091, 2147483648
        %v2164 = vxor.u32 %v2094, 2147483648
        %v2165 = vxor.u32 %v2099, 2147483648
        %v2166 = vxor.u32 %v2102, 2147483648
        %v2167 = vxor.u32 %v2107, 2147483648
        %v2168 = vxor.u32 %v2110, 2147483648
        %v2169 = vxor.u32 %v2115, 2147483648
        %v2170 = vxor.u32 %v2118, 2147483648
        %v2171 = vxor.u32 %v2123, 2147483648
        %v2172 = vxor.u32 %v2126, 2147483648
        %v2173 = vxor.u32 %v2131, 2147483648
        %v2174 = vxor.u32 %v2134, 2147483648
        %v2175 = vxor.u32 %v2139, 2147483648
        %v2176 = vxor.u32 %v2142, 2147483648
        %v2177 = vmul.f32 %v2145, 1.442695
        %v2178 = vpow.pop %v2177
        %v2179 = vmul.f32 %v2146, 1.442695
        %v2180 = vpow.pop %v2179
        %v2181 = vmul.f32 %v2147, 1.442695
        %v2182 = vpow.pop %v2181
        %v2183 = vmul.f32 %v2148, 1.442695
        %v2184 = vpow.pop %v2183
        %v2185 = vmul.f32 %v2149, 1.442695
        %v2186 = vpow.pop %v2185
        %v2187 = vmul.f32 %v2150, 1.442695
        %v2188 = vpow.pop %v2187
        %v2189 = vmul.f32 %v2151, 1.442695
        %v2190 = vpow.pop %v2189
        %v2191 = vmul.f32 %v2152, 1.442695
        %v2192 = vpow.pop %v2191
        %v2193 = vmul.f32 %v2153, 1.442695
        %v2194 = vpow.pop %v2193
        %v2195 = vmul.f32 %v2154, 1.442695
        %v2196 = vpow.pop %v2195
        %v2197 = vmul.f32 %v2155, 1.442695
        %v2198 = vpow.pop %v2197
        %v2199 = vmul.f32 %v2156, 1.442695
        %v2200 = vpow.pop %v2199
        %v2201 = vmul.f32 %v2157, 1.442695
        %v2202 = vpow.pop %v2201
        %v2203 = vmul.f32 %v2158, 1.442695
        %v2204 = vpow.pop %v2203
        %v2205 = vmul.f32 %v2159, 1.442695
        %v2206 = vpow.pop %v2205
        %v2207 = vmul.f32 %v2160, 1.442695
        %v2208 = vpow.pop %v2207
        %v2209 = vmul.f32 %v2161, 1.442695
        %v2210 = vpow.pop %v2209
        %v2211 = vmul.f32 %v2162, 1.442695
        %v2212 = vpow.pop %v2211
        %v2213 = vmul.f32 %v2163, 1.442695
        %v2214 = vpow.pop %v2213
        %v2215 = vmul.f32 %v2164, 1.442695
        %v2216 = vpow.pop %v2215
        %v2217 = vmul.f32 %v2165, 1.442695
        %v2218 = vpow.pop %v2217
        %v2219 = vmul.f32 %v2166, 1.442695
        %v2220 = vpow.pop %v2219
        %v2221 = vmul.f32 %v2167, 1.442695
        %v2222 = vpow.pop %v2221
        %v2223 = vmul.f32 %v2168, 1.442695
        %v2224 = vpow.pop %v2223
        %v2225 = vmul.f32 %v2169, 1.442695
        %v2226 = vpow.pop %v2225
        %v2227 = vmul.f32 %v2170, 1.442695
        %v2228 = vpow.pop %v2227
        %v2229 = vmul.f32 %v2171, 1.442695
        %v2230 = vpow.pop %v2229
        %v2231 = vmul.f32 %v2172, 1.442695
        %v2232 = vpow.pop %v2231
        %v2233 = vmul.f32 %v2173, 1.442695
        %v2234 = vpow.pop %v2233
        %v2235 = vmul.f32 %v2174, 1.442695
        %v2236 = vpow.pop %v2235
        %v2237 = vmul.f32 %v2175, 1.442695
        %v2238 = vpow.pop %v2237
        %v2239 = vmul.f32 %v2176, 1.442695
        %v2240 = vpow.pop %v2239
        %v2241 = vadd.f32 %v2178, 1.0
        %v2242 = vadd.f32 %v2180, 1.0
        %v2243 = vadd.f32 %v2182, 1.0
        %v2244 = vadd.f32 %v2184, 1.0
        %v2245 = vadd.f32 %v2186, 1.0
        %v2246 = vadd.f32 %v2188, 1.0
        %v2247 = vadd.f32 %v2190, 1.0
        %v2248 = vadd.f32 %v2192, 1.0
        %v2249 = vadd.f32 %v2194, 1.0
        %v2250 = vadd.f32 %v2196, 1.0
        %v2251 = vadd.f32 %v2198, 1.0
        %v2252 = vadd.f32 %v2200, 1.0
        %v2253 = vadd.f32 %v2202, 1.0
        %v2254 = vadd.f32 %v2204, 1.0
        %v2255 = vadd.f32 %v2206, 1.0
        %v2256 = vadd.f32 %v2208, 1.0
        %v2257 = vadd.f32 %v2210, 1.0
        %v2258 = vadd.f32 %v2212, 1.0
        %v2259 = vadd.f32 %v2214, 1.0
        %v2260 = vadd.f32 %v2216, 1.0
        %v2261 = vadd.f32 %v2218, 1.0
        %v2262 = vadd.f32 %v2220, 1.0
        %v2263 = vadd.f32 %v2222, 1.0
        %v2264 = vadd.f32 %v2224, 1.0
        %v2265 = vadd.f32 %v2226, 1.0
        %v2266 = vadd.f32 %v2228, 1.0
        %v2267 = vadd.f32 %v2230, 1.0
        %v2268 = vadd.f32 %v2232, 1.0
        %v2269 = vadd.f32 %v2234, 1.0
        %v2270 = vadd.f32 %v2236, 1.0
        %v2271 = vadd.f32 %v2238, 1.0
        %v2272 = vadd.f32 %v2240, 1.0
        %v2273 = vrcp.pop %v2241
        %v2274 = vmul.f32 1.0, %v2273
        %v2275 = vrcp.pop %v2242
        %v2276 = vmul.f32 1.0, %v2275
        %v2277 = vrcp.pop %v2243
        %v2278 = vmul.f32 1.0, %v2277
        %v2279 = vrcp.pop %v2244
        %v2280 = vmul.f32 1.0, %v2279
        %v2281 = vrcp.pop %v2245
        %v2282 = vmul.f32 1.0, %v2281
        %v2283 = vrcp.pop %v2246
        %v2284 = vmul.f32 1.0, %v2283
        %v2285 = vrcp.pop %v2247
        %v2286 = vmul.f32 1.0, %v2285
        %v2287 = vrcp.pop %v2248
        %v2288 = vmul.f32 1.0, %v2287
        %v2289 = vrcp.pop %v2249
        %v2290 = vmul.f32 1.0, %v2289
        %v2291 = vrcp.pop %v2250
        %v2292 = vmul.f32 1.0, %v2291
        %v2293 = vrcp.pop %v2251
        %v2294 = vmul.f32 1.0, %v2293
        %v2295 = vrcp.pop %v2252
        %v2296 = vmul.f32 1.0, %v2295
        %v2297 = vrcp.pop %v2253
        %v2298 = vmul.f32 1.0, %v2297
        %v2299 = vrcp.pop %v2254
        %v2300 = vmul.f32 1.0, %v2299
        %v2301 = vrcp.pop %v2255
        %v2302 = vmul.f32 1.0, %v2301
        %v2303 = vrcp.pop %v2256
        %v2304 = vmul.f32 1.0, %v2303
        %v2305 = vrcp.pop %v2257
        %v2306 = vmul.f32 1.0, %v2305
        %v2307 = vrcp.pop %v2258
        %v2308 = vmul.f32 1.0, %v2307
        %v2309 = vrcp.pop %v2259
        %v2310 = vmul.f32 1.0, %v2309
        %v2311 = vrcp.pop %v2260
        %v2312 = vmul.f32 1.0, %v2311
        %v2313 = vrcp.pop %v2261
        %v2314 = vmul.f32 1.0, %v2313
        %v2315 = vrcp.pop %v2262
        %v2316 = vmul.f32 1.0, %v2315
        %v2317 = vrcp.pop %v2263
        %v2318 = vmul.f32 1.0, %v2317
        %v2319 = vrcp.pop %v2264
        %v2320 = vmul.f32 1.0, %v2319
        %v2321 = vrcp.pop %v2265
        %v2322 = vmul.f32 1.0, %v2321
        %v2323 = vrcp.pop %v2266
        %v2324 = vmul.f32 1.0, %v2323
        %v2325 = vrcp.pop %v2267
        %v2326 = vmul.f32 1.0, %v2325
        %v2327 = vrcp.pop %v2268
        %v2328 = vmul.f32 1.0, %v2327
        %v2329 = vrcp.pop %v2269
        %v2330 = vmul.f32 1.0, %v2329
        %v2331 = vrcp.pop %v2270
        %v2332 = vmul.f32 1.0, %v2331
        %v2333 = vrcp.pop %v2271
        %v2334 = vmul.f32 1.0, %v2333
        %v2335 = vrcp.pop %v2272
        %v2336 = vmul.f32 1.0, %v2335
        %v2337 = vsub.f32 %v668, %v702
        %v2338 = vsub.f32 %v669, %v705
        %v2339 = vsub.f32 %v670, %v708
        %v2340 = vsub.f32 %v671, %v711
        %v2341 = vsub.f32 %v672, %v714
        %v2342 = vsub.f32 %v673, %v717
        %v2343 = vsub.f32 %v674, %v720
        %v2344 = vsub.f32 %v675, %v723
        %v2345 = vsub.f32 %v676, %v726
        %v2346 = vsub.f32 %v677, %v729
        %v2347 = vsub.f32 %v678, %v732
        %v2348 = vsub.f32 %v679, %v735
        %v2349 = vsub.f32 %v680, %v738
        %v2350 = vsub.f32 %v681, %v741
        %v2351 = vsub.f32 %v682, %v744
        %v2352 = vsub.f32 %v683, %v747
        %v2353 = vsub.f32 %v684, %v750
        %v2354 = vsub.f32 %v685, %v753
        %v2355 = vsub.f32 %v686, %v756
        %v2356 = vsub.f32 %v687, %v759
        %v2357 = vsub.f32 %v688, %v762
        %v2358 = vsub.f32 %v689, %v765
        %v2359 = vsub.f32 %v690, %v768
        %v2360 = vsub.f32 %v691, %v771
        %v2361 = vsub.f32 %v692, %v774
        %v2362 = vsub.f32 %v693, %v777
        %v2363 = vsub.f32 %v694, %v780
        %v2364 = vsub.f32 %v695, %v783
        %v2365 = vsub.f32 %v696, %v786
        %v2366 = vsub.f32 %v697, %v789
        %v2367 = vsub.f32 %v698, %v792
        %v2368 = vsub.f32 %v699, %v795
        %v2369 = vmul.f32 %v2274, %v2337
        %v2370 = vmul.f32 %v2276, %v2338
        %v2371 = vmul.f32 %v2278, %v2339
        %v2372 = vmul.f32 %v2280, %v2340
        %v2373 = vmul.f32 %v2282, %v2341
        %v2374 = vmul.f32 %v2284, %v2342
        %v2375 = vmul.f32 %v2286, %v2343
        %v2376 = vmul.f32 %v2288, %v2344
        %v2377 = vmul.f32 %v2290, %v2345
        %v2378 = vmul.f32 %v2292, %v2346
        %v2379 = vmul.f32 %v2294, %v2347
        %v2380 = vmul.f32 %v2296, %v2348
        %v2381 = vmul.f32 %v2298, %v2349
        %v2382 = vmul.f32 %v2300, %v2350
        %v2383 = vmul.f32 %v2302, %v2351
        %v2384 = vmul.f32 %v2304, %v2352
        %v2385 = vmul.f32 %v2306, %v2353
        %v2386 = vmul.f32 %v2308, %v2354
        %v2387 = vmul.f32 %v2310, %v2355
        %v2388 = vmul.f32 %v2312, %v2356
        %v2389 = vmul.f32 %v2314, %v2357
        %v2390 = vmul.f32 %v2316, %v2358
        %v2391 = vmul.f32 %v2318, %v2359
        %v2392 = vmul.f32 %v2320, %v2360
        %v2393 = vmul.f32 %v2322, %v2361
        %v2394 = vmul.f32 %v2324, %v2362
        %v2395 = vmul.f32 %v2326, %v2363
        %v2396 = vmul.f32 %v2328, %v2364
        %v2397 = vmul.f32 %v2330, %v2365
        %v2398 = vmul.f32 %v2332, %v2366
        %v2399 = vmul.f32 %v2334, %v2367
        %v2400 = vmul.f32 %v2336, %v2368
        %v2401 = vadd.f32 %v702, %v2369
        %v2402 = vadd.f32 %v705, %v2370
        %v2403 = vadd.f32 %v708, %v2371
        %v2404 = vadd.f32 %v711, %v2372
        %v2405 = vadd.f32 %v714, %v2373
        %v2406 = vadd.f32 %v717, %v2374
        %v2407 = vadd.f32 %v720, %v2375
        %v2408 = vadd.f32 %v723, %v2376
        %v2409 = vadd.f32 %v726, %v2377
        %v2410 = vadd.f32 %v729, %v2378
        %v2411 = vadd.f32 %v732, %v2379
        %v2412 = vadd.f32 %v735, %v2380
        %v2413 = vadd.f32 %v738, %v2381
        %v2414 = vadd.f32 %v741, %v2382
        %v2415 = vadd.f32 %v744, %v2383
        %v2416 = vadd.f32 %v747, %v2384
        %v2417 = vadd.f32 %v750, %v2385
        %v2418 = vadd.f32 %v753, %v2386
        %v2419 = vadd.f32 %v756, %v2387
        %v2420 = vadd.f32 %v759, %v2388
        %v2421 = vadd.f32 %v762, %v2389
        %v2422 = vadd.f32 %v765, %v2390
        %v2423 = vadd.f32 %v768, %v2391
        %v2424 = vadd.f32 %v771, %v2392
        %v2425 = vadd.f32 %v774, %v2393
        %v2426 = vadd.f32 %v777, %v2394
        %v2427 = vadd.f32 %v780, %v2395
        %v2428 = vadd.f32 %v783, %v2396
        %v2429 = vadd.f32 %v786, %v2397
        %v2430 = vadd.f32 %v789, %v2398
        %v2431 = vadd.f32 %v792, %v2399
        %v2432 = vadd.f32 %v795, %v2400
        %2433 = vst [vmem:[%s311] sm:$0xff] %v2401
        %2434 = vst [vmem:[%s311 + $0x8] sm:$0xff] %v2402
        %2435 = vst [vmem:[%s311 + $0x10] sm:$0xff] %v2403
        %2436 = vst [vmem:[%s311 + $0x18] sm:$0xff] %v2404
        %2437 = vst [vmem:[%s311 + $0x20] sm:$0xff] %v2405
        %2438 = vst [vmem:[%s311 + $0x28] sm:$0xff] %v2406
        %2439 = vst [vmem:[%s311 + $0x30] sm:$0xff] %v2407
        %2440 = vst [vmem:[%s311 + $0x38] sm:$0xff] %v2408
        %2441 = vst [vmem:[%s311 + $0x40] sm:$0xff] %v2409
        %2442 = vst [vmem:[%s311 + $0x48] sm:$0xff] %v2410
        %2443 = vst [vmem:[%s311 + $0x50] sm:$0xff] %v2411
        %2444 = vst [vmem:[%s311 + $0x58] sm:$0xff] %v2412
        %2445 = vst [vmem:[%s311 + $0x60] sm:$0xff] %v2413
        %2446 = vst [vmem:[%s311 + $0x68] sm:$0xff] %v2414
        %2447 = vst [vmem:[%s311 + $0x70] sm:$0xff] %v2415
        %2448 = vst [vmem:[%s311 + $0x78] sm:$0xff] %v2416
        %2449 = vst [vmem:[%s311 + $0x80] sm:$0xff] %v2417
        %2450 = vst [vmem:[%s311 + $0x88] sm:$0xff] %v2418
        %2451 = vst [vmem:[%s311 + $0x90] sm:$0xff] %v2419
        %2452 = vst [vmem:[%s311 + $0x98] sm:$0xff] %v2420
        %2453 = vst [vmem:[%s311 + $0xa0] sm:$0xff] %v2421
        %2454 = vst [vmem:[%s311 + $0xa8] sm:$0xff] %v2422
        %2455 = vst [vmem:[%s311 + $0xb0] sm:$0xff] %v2423
        %2456 = vst [vmem:[%s311 + $0xb8] sm:$0xff] %v2424
        %2457 = vst [vmem:[%s311 + $0xc0] sm:$0xff] %v2425
        %2458 = vst [vmem:[%s311 + $0xc8] sm:$0xff] %v2426
        %2459 = vst [vmem:[%s311 + $0xd0] sm:$0xff] %v2427
        %2460 = vst [vmem:[%s311 + $0xd8] sm:$0xff] %v2428
        %2461 = vst [vmem:[%s311 + $0xe0] sm:$0xff] %v2429
        %2462 = vst [vmem:[%s311 + $0xe8] sm:$0xff] %v2430
        %2463 = vst [vmem:[%s311 + $0xf0] sm:$0xff] %v2431
        %2464 = vst [vmem:[%s311 + $0xf8] sm:$0xff] %v2432
        %s2465 = sand.u32 %s142, 1
        %s2466 = scalar_lea.sflag [#allocation4], %s2465
        %s2467 = sand.u32 %s142, 1
        %s2468 = smul.addr %s2467, 256
        %s2469 = scalar_lea.vmem [#allocation10], %s2468
        // Predicated region
        $region57: #{tpu_custom_call.1} parent=39 // pred_check
          %p2470 = pneg %p152
        $region58: #{tpu_custom_call.1} parent=39 // pred_check_branch
          %2472 = sbr.rel (%p2470) target = $region60
        $region59: #{tpu_custom_call.1} parent=39 // pred_region
          %s2473 = smul.u32 32, %s24
          %s2475 = ssub.s32 4096, 4096
          %2476 = vsyncadd %s2466, %s2475
          %s2477 = smul.addr %s2473, 128
          %s2478 = scalar_lea.hbm %s5, %s2477
          %s2479 = sshll.u32 %s2469, 4
          %s2480 = int_to_ptr.vmem [resolvable:$true] %s2479
          %2485 = dma.vmem_to_hbm [thread:$0]  %s2480, 4096, %s2478, %s2466, 128, 128, 8
        $region60: #{tpu_custom_call.1} parent=39 // pred_fallthru
          _
      $region40: #{tpu_custom_call.1} parent=5 // pred_fallthru
        _
      %p2486 = scmp.le.s32.totalorder 2, %s19
      // Predicated region
      $region61: #{tpu_custom_call.1} parent=5 // pred_check
        %p2487 = pneg %p2486
      $region62: #{tpu_custom_call.1} parent=5 // pred_check_branch
        %2489 = sbr.rel (%p2487) target = $region64
      $region63: #{tpu_custom_call.1} parent=5 // pred_region
        %s2490 = ssub.s32 %s19, 2
        // Predicated region
        $region65: #{tpu_custom_call.1} parent=63 // pred_check
          %p2491 = pneg %p158
        $region66: #{tpu_custom_call.1} parent=63 // pred_check_branch
          %2493 = sbr.rel (%p2491) target = $region68
        $region67: #{tpu_custom_call.1} parent=63 // pred_region
          %s2494 = sand.u32 %s143, 1
          %s2495 = scalar_lea.sflag [#allocation4], %s2494
          %s2496 = sand.u32 %s143, 1
          %s2497 = smul.addr %s2496, 256
          %s2498 = scalar_lea.vmem [#allocation10], %s2497
          %2499 = dma.done %s2495, 4096
        $region68: #{tpu_custom_call.1} parent=63 // pred_fallthru
          _
      $region64: #{tpu_custom_call.1} parent=5 // pred_fallthru
        _
    $region6: #{tpu_custom_call.1} parent=1 // loop_footer
      %s23 = sadd.s32 1, %s19
    $region7: #{tpu_custom_call.1} parent=1 // loop_footer_branch
      %18 = sbr.rel target = $region3
    $region8: #{tpu_custom_call.1} parent=1 // loop_exit
      _
    %2500 = vsyncpa [#allocation3], 1
    %s2501 = scalar_lea.sflag [#allocation3], 1
    %2502 = vsyncpa %s2501, 1
    %2503 = vsyncpa [#allocation6], 1
    %2504 = vsyncpa [#allocation9], 1
    %2505 = vsyncpa [#allocation4], 1
    %s2506 = scalar_lea.sflag [#allocation4], 1
    %2507 = vsyncpa %s2506, 1

</llo_original>
